<compile_context>
chip_gen: v5e
topology: v5e:2x2
jax: 0.10.0
libtpu: 0.0.40
codegen_flags: <defaults>
</compile_context>

<pallas_src>
import functools

import jax
import jax.numpy as jnp
from jax.experimental import pallas as pl
from jax.experimental.pallas import tpu as pltpu


# ----------------------------------------------------------------------------- helpers
def _pad_axis(x, axis, mult):
    """Zero-pad `x` along `axis` up to a multiple of `mult`."""
    pad = (-x.shape[axis]) % mult
    if pad == 0:
        return x
    widths = [(0, 0)] * x.ndim
    widths[axis] = (0, pad)
    return jnp.pad(x, widths)


def _full_spec(shape):
    """BlockSpec that keeps the whole (small) array resident across the 1-D grid."""
    return pl.BlockSpec(shape, lambda v: (0,) * len(shape))


# ----------------------------------------------------------------------------- encoder
def _encoder_kernel(xn_ref, w1_ref, b1_ref, w2_ref, b2_ref,
                    wmu_ref, bmu_ref, wls_ref, bls_ref,
                    theta_ref, kl_ref, h1_acc, *, batch):
    f32 = jnp.float32
    v = pl.program_id(0)

    @pl.when(v == 0)
    def _():
        h1_acc[...] = jnp.zeros_like(h1_acc)

    # First Linear (V -> H1), accumulated across vocab tiles (zero-padded tiles add 0).
    h1_acc[...] += jnp.dot(xn_ref[...], w1_ref[...], preferred_element_type=f32)

    @pl.when(v == pl.num_programs(0) - 1)
    def _():
        h = jnp.tanh(h1_acc[...] + b1_ref[...])
        h = jnp.tanh(jnp.dot(h, w2_ref[...], preferred_element_type=f32) + b2_ref[...])
        mu = jnp.dot(h, wmu_ref[...], preferred_element_type=f32) + bmu_ref[...]
        logsig = 2.0 * (jnp.dot(h, wls_ref[...], preferred_element_type=f32) + bls_ref[...])
        # kl = -0.5 * sum(1 + logsig - mu^2 - exp(logsig), -1).mean()   (mean over full batch)
        kl_per = -0.5 * jnp.sum(1.0 + logsig - mu * mu - jnp.exp(logsig),
                                axis=-1, keepdims=True)                      # (B, 1)
        kl_ref[...] = jnp.sum(kl_per, axis=0, keepdims=True) / batch         # (1, 1)
        # eval mode: z = mu ; theta = softmax(z, -1)
        theta_ref[...] = jax.nn.softmax(mu, axis=-1)


def _encode(xn, w1, b1, w2, b2, wmu, bmu, wls, bls, *, v_tile):
    B, V = xn.shape
    H1 = w1.shape[1]
    H = w2.shape[1]
    T = wmu.shape[1]

    if V <= v_tile:
        vt = V                      # single full-width tile (no (8,128) constraint)
    else:
        vt = v_tile                 # must be a multiple of 128
        xn = _pad_axis(xn, 1, vt)   # zero columns contribute 0 to h1
        w1 = _pad_axis(w1, 0, vt)
    grid = (xn.shape[1] // vt,)

    theta, kl = pl.pallas_call(
        functools.partial(_encoder_kernel, batch=B),
        out_shape=(jax.ShapeDtypeStruct((B, T), jnp.float32),
                   jax.ShapeDtypeStruct((1, 1), jnp.float32)),
        grid=grid,
        in_specs=[
            pl.BlockSpec((B, vt), lambda v: (0, v)),     # normalized counts tile (streamed)
            pl.BlockSpec((vt, H1), lambda v: (v, 0)),    # W1 tile (streamed)
            _full_spec((1, H1)), _full_spec((H1, H)), _full_spec((1, H)),
            _full_spec((H, T)), _full_spec((1, T)), _full_spec((H, T)), _full_spec((1, T)),
        ],
        out_specs=(_full_spec((B, T)), _full_spec((1, 1))),
        scratch_shapes=[pltpu.VMEM((B, H1), jnp.float32)],
        compiler_params=pltpu.CompilerParams(dimension_semantics=("arbitrary",)),
    )(xn, w1, b1, w2, b2, wmu, bmu, wls, bls)
    return theta, kl


# ----------------------------------------------------------------------------- beta log-sum-exp pre-pass
def _beta_lse_kernel(waT_ref, embT_ref, lse_ref):
    f32 = jnp.float32
    # logits in lane-dense (T, V) layout; softmax normalizer over the FULL vocab.
    logits = jnp.dot(waT_ref[...], embT_ref[...], preferred_element_type=f32)   # (T, V)
    m = jnp.max(logits, axis=-1, keepdims=True)                                 # (T, 1)
    s = jnp.sum(jnp.exp(logits - m), axis=-1, keepdims=True)                    # (T, 1)
    lse_ref[...] = m + jnp.log(s)


def _beta_lse(waT, embT):
    T = waT.shape[0]
    vmem = pl.BlockSpec(memory_space=pltpu.MemorySpace.VMEM)
    return pl.pallas_call(
        _beta_lse_kernel,
        out_shape=jax.ShapeDtypeStruct((T, 1), jnp.float32),
        in_specs=[vmem, vmem],
        out_specs=vmem,
    )(waT, embT)


# ----------------------------------------------------------------------------- decode + NLL
def _decode_kernel(x_ref, theta_ref, embT_ref, waT_ref, lse_ref,
                   recon_ref, nll_acc, *, batch):
    f32 = jnp.float32
    v = pl.program_id(0)

    @pl.when(v == 0)
    def _():
        nll_acc[...] = jnp.zeros_like(nll_acc)

    # beta tile in lane-dense (T, Vt) layout: softmax over the full vocab is exact
    # because its normalizer (per-topic lse) was precomputed over the whole vocab.
    logits = jnp.dot(waT_ref[...], embT_ref[...], preferred_element_type=f32)   # (T, Vt)
    beta = jnp.exp(logits - lse_ref[...])                                       # (T, Vt)
    preds = jnp.dot(theta_ref[...], beta, preferred_element_type=f32)           # (B, Vt)

    x = x_ref[...]
    # nll = -(log(preds) * raw).sum(-1); zero-count columns (incl. zero-padded vocab
    # columns) contribute exactly 0, which also avoids 0 * log(underflow) = NaN.
    contrib = jnp.where(x > 0.0, jnp.log(preds) * x, 0.0)
    nll_acc[...] += -jnp.sum(contrib, axis=-1, keepdims=True)                   # (B, 1)

    @pl.when(v == pl.num_programs(0) - 1)
    def _():
        recon_ref[...] = jnp.sum(nll_acc[...], axis=0, keepdims=True) / batch   # (1, 1)


def _decode_nll(x_raw, theta, embT, waT, lse, *, v_tile):
    B, V = x_raw.shape
    E = embT.shape[0]
    T = theta.shape[1]

    if V <= v_tile:
        vt = V
    else:
        vt = v_tile
        x_raw = _pad_axis(x_raw, 1, vt)   # zero counts -> zero NLL contribution
        embT = _pad_axis(embT, 1, vt)
    grid = (x_raw.shape[1] // vt,)

    return pl.pallas_call(
        functools.partial(_decode_kernel, batch=B),
        out_shape=jax.ShapeDtypeStruct((1, 1), jnp.float32),
        grid=grid,
        in_specs=[
            pl.BlockSpec((B, vt), lambda v: (0, v)),    # raw counts tile (dominant stream)
            _full_spec((B, T)),                         # theta (resident)
            pl.BlockSpec((E, vt), lambda v: (0, v)),    # embedding^T tile (streamed, tiny)
            _full_spec((T, E)),                         # W_alpha^T (resident)
            _full_spec((T, 1)),                         # per-topic log-sum-exp (resident)
        ],
        out_specs=_full_spec((1, 1)),
        scratch_shapes=[pltpu.VMEM((B, 1), jnp.float32)],
        compiler_params=pltpu.CompilerParams(dimension_semantics=("arbitrary",)),
    )(x_raw, theta, embT, waT, lse)


# ----------------------------------------------------------------------------- forward
def etm_forward(Gene, Gene_n, Peak, Peak_n, rho_eta, params, num_peak, *, v_tile=512):
    """ETM.forward(Gene, Gene_normalized, Peak, Peak_normalized, rho_eta) in eval mode."""
    assert v_tile % 128 == 0, "v_tile must be a multiple of 128"
    p = params

    # split_tensor(rho_eta, num_peak): eta rows first, rho rows after.  Split + transpose
    # once here (tiny, one-time) so the in-kernel beta math is lane-dense (T / emb, V).
    eta_T = rho_eta[:num_peak, :].T          # (emb, num_peak)
    rho_T = rho_eta[num_peak:, :].T          # (emb, num_gene)
    waT = p["walpha"].T                      # (T, emb)
    wasT = p["wastar"].T                     # (T, emb)

    # Phase 1: encoders (theta + KL), streaming the normalized matrices once.
    theta_d, kld_d = _encode(Gene_n, p["w1g"], p["b1g"], p["w2g"], p["b2g"],
                             p["wmu"], p["bmu"], p["wls"], p["bls"], v_tile=v_tile)
    theta_j, kld_j = _encode(Peak_n, p["w1p"], p["b1p"], p["w2p"], p["b2p"],
                             p["wmu"], p["bmu"], p["wls"], p["bls"], v_tile=v_tile)

    # Phase 2: per-topic softmax normalizers over the full vocab (tiny pre-pass).
    lse_g = _beta_lse(waT, rho_T)
    lse_p = _beta_lse(wasT, eta_T)

    # Phase 3: decode + NLL, streaming the raw matrices once.
    recon_g = _decode_nll(Gene, theta_d, rho_T, waT, lse_g, v_tile=v_tile)
    recon_p = _decode_nll(Peak, theta_j, eta_T, wasT, lse_p, v_tile=v_tile)

    recon = recon_g[0, 0] + recon_p[0, 0]    # aggregate=True: mean over batch
    kld = kld_d[0, 0] + kld_j[0, 0]
    return recon, kld


# ----------------------------------------------------------------------------- reference
def etm_reference(Gene, Gene_n, Peak, Peak_n, rho_eta, p, num_peak):
    """Pure-JAX reference mirroring the PyTorch module in eval mode."""
    def enc(x, w1, b1, w2, b2):
        h = jnp.tanh(x @ w1 + b1)
        h = jnp.tanh(h @ w2 + b2)
        mu = h @ p["wmu"] + p["bmu"]
        ls = 2.0 * (h @ p["wls"] + p["bls"])
        kl = (-0.5 * jnp.sum(1.0 + ls - mu**2 - jnp.exp(ls), axis=-1)).mean()
        return jax.nn.softmax(mu, axis=-1), kl

    th_d, kl_d = enc(Gene_n, p["w1g"], p["b1g"], p["w2g"], p["b2g"])
    th_j, kl_j = enc(Peak_n, p["w1p"], p["b1p"], p["w2p"], p["b2p"])
    eta_m, rho_m = rho_eta[:num_peak], rho_eta[num_peak:]
    beta_g = jax.nn.softmax(rho_m @ p["walpha"], axis=0).T
    beta_p = jax.nn.softmax(eta_m @ p["wastar"], axis=0).T
    preds_g = th_d @ beta_g
    preds_p = th_j @ beta_p
    recon = (-(jnp.log(preds_g) * Gene).sum(-1)
             - (jnp.log(preds_p) * Peak).sum(-1)).mean()
    return recon, kl_d + kl_j


# ----------------------------------------------------------------------------- test
if __name__ == "__main__":
    # Consistent matmul precision for kernel-vs-reference comparison.
    jax.config.update("jax_default_matmul_precision", "highest")

    # Small shapes that still exercise the vocab grid (multiple tiles) and the
    # ragged-vocab (zero-padding) path: 640 -> 3 tiles of 256, 1000 -> 4 tiles.
    B = 16
    num_gene = 640
    num_peak = 1000
    t_hidden = 64
    t_hidden_peak = 48
    emb_size = 16
    num_topics = 8
    v_tile = 256

    key = jax.random.PRNGKey(0)
    ks = jax.random.split(key, 20)

    def w(k, shape, scale=0.1):
        return (scale * jax.random.normal(k, shape)).astype(jnp.float32)

    # nn.Linear weights stored pre-transposed as (in_features, out_features): y = x @ W + b.
    params = {
        "w1g": w(ks[0], (num_gene, t_hidden)),
        "b1g": w(ks[1], (1, t_hidden)),
        "w2g": w(ks[2], (t_hidden, t_hidden)),
        "b2g": w(ks[3], (1, t_hidden)),
        "w1p": w(ks[4], (num_peak, t_hidden_peak)),
        "b1p": w(ks[5], (1, t_hidden_peak)),
        "w2p": w(ks[6], (t_hidden_peak, t_hidden)),
        "b2p": w(ks[7], (1, t_hidden)),
        "wmu": w(ks[8], (t_hidden, num_topics)),
        "bmu": w(ks[9], (1, num_topics)),
        "wls": w(ks[10], (t_hidden, num_topics)),
        "bls": w(ks[11], (1, num_topics)),
        "walpha": w(ks[12], (emb_size, num_topics)),
        "wastar": w(ks[13], (emb_size, num_topics)),
    }

    # Non-negative "bag-of-words" style inputs; normalized versions are row-normalized.
    Gene = jnp.abs(jax.random.normal(ks[14], (B, num_gene))).astype(jnp.float32)
    Peak = jnp.abs(jax.random.normal(ks[15], (B, num_peak))).astype(jnp.float32)
    Gene_n = Gene / jnp.sum(Gene, axis=-1, keepdims=True)
    Peak_n = Peak / jnp.sum(Peak, axis=-1, keepdims=True)
    # rho_eta: eta rows first (num_peak), then rho rows (num_gene).
    rho_eta = jax.random.normal(ks[16], (num_peak + num_gene, emb_size)).astype(jnp.float32)

    recon, kld = etm_forward(Gene, Gene_n, Peak, Peak_n, rho_eta, params, num_peak,
                             v_tile=v_tile)
    recon, kld = jax.block_until_ready((recon, kld))

    recon_ref, kld_ref = etm_reference(Gene, Gene_n, Peak, Peak_n, rho_eta, params, num_peak)
    assert jnp.allclose(recon, recon_ref, rtol=1e-3, atol=1e-3), (recon, recon_ref)
    assert jnp.allclose(kld, kld_ref, rtol=1e-3, atol=1e-3), (kld, kld_ref)

    print("KERNEL_OK")
</pallas_src>

<mosaic_0001>
module attributes {stable_mosaic.version = 11 : i64} {
  func.func @_encoder_kernel(%arg0: i32, %arg1: memref<16x256xf32, #tpu.memory_space<vmem>>, %arg2: memref<256x64xf32, #tpu.memory_space<vmem>>, %arg3: memref<1x64xf32, #tpu.memory_space<vmem>>, %arg4: memref<64x64xf32, #tpu.memory_space<vmem>>, %arg5: memref<1x64xf32, #tpu.memory_space<vmem>>, %arg6: memref<64x8xf32, #tpu.memory_space<vmem>>, %arg7: memref<1x8xf32, #tpu.memory_space<vmem>>, %arg8: memref<64x8xf32, #tpu.memory_space<vmem>>, %arg9: memref<1x8xf32, #tpu.memory_space<vmem>>, %arg10: memref<16x8xf32, #tpu.memory_space<vmem>>, %arg11: memref<1x1xf32, #tpu.memory_space<vmem>>, %arg12: memref<16x64xf32, #tpu.memory_space<vmem>>) attributes {dimension_semantics = [#tpu.dimension_semantics<arbitrary>], iteration_bounds = array<i64: 3>, scalar_prefetch = 0 : i64, scratch_operands = 1 : i64, tpu.core_type = #tpu.core_type<tc>, window_params = [{transform_indices = @transform_0, window_bounds = array<i64: 16, 256>}, {transform_indices = @transform_1, window_bounds = array<i64: 256, 64>}, {pipeline_mode = #tpu.pipeline_mode<synchronous>, transform_indices = @transform_2, window_bounds = array<i64: 1, 64>}, {pipeline_mode = #tpu.pipeline_mode<synchronous>, transform_indices = @transform_3, window_bounds = array<i64: 64, 64>}, {pipeline_mode = #tpu.pipeline_mode<synchronous>, transform_indices = @transform_4, window_bounds = array<i64: 1, 64>}, {pipeline_mode = #tpu.pipeline_mode<synchronous>, transform_indices = @transform_5, window_bounds = array<i64: 64, 8>}, {pipeline_mode = #tpu.pipeline_mode<synchronous>, transform_indices = @transform_6, window_bounds = array<i64: 1, 8>}, {pipeline_mode = #tpu.pipeline_mode<synchronous>, transform_indices = @transform_7, window_bounds = array<i64: 64, 8>}, {pipeline_mode = #tpu.pipeline_mode<synchronous>, transform_indices = @transform_8, window_bounds = array<i64: 1, 8>}, {pipeline_mode = #tpu.pipeline_mode<synchronous>, transform_indices = @transform_9, window_bounds = array<i64: 16, 8>}, {pipeline_mode = #tpu.pipeline_mode<synchronous>, transform_indices = @transform_10, window_bounds = array<i64: 1, 1>}]} {
    %c0_i32 = arith.constant 0 : i32
    %0 = arith.cmpi eq, %arg0, %c0_i32 : i32
    %1 = arith.extui %0 : i1 to i32
    %c0_i32_0 = arith.constant 0 : i32
    %2 = arith.cmpi ne, %1, %c0_i32_0 : i32
    scf.if %2 {
      %cst_9 = arith.constant 0.000000e+00 : f32
      %12 = vector.broadcast %cst_9 : f32 to vector<16x64xf32>
      %c0_10 = arith.constant 0 : index
      %c0_11 = arith.constant 0 : index
      %13 = vector.load %arg12[%c0_10, %c0_11] : memref<16x64xf32, #tpu.memory_space<vmem>>, vector<16x64xf32>
      tpu.vector_store %arg12[%c0_10, %c0_11], %12 {strides = array<i32>} : memref<16x64xf32, #tpu.memory_space<vmem>>, vector<16x64xf32>,
    } else {
    }
    %c0 = arith.constant 0 : index
    %c0_1 = arith.constant 0 : index
    %3 = vector.load %arg12[%c0, %c0_1] : memref<16x64xf32, #tpu.memory_space<vmem>>, vector<16x64xf32>
    %c0_2 = arith.constant 0 : index
    %c0_3 = arith.constant 0 : index
    %4 = vector.load %arg1[%c0_2, %c0_3] : memref<16x256xf32, #tpu.memory_space<vmem>>, vector<16x256xf32>
    %c0_4 = arith.constant 0 : index
    %c0_5 = arith.constant 0 : index
    %5 = vector.load %arg2[%c0_4, %c0_5] : memref<256x64xf32, #tpu.memory_space<vmem>>, vector<256x64xf32>
    %cst = arith.constant dense<0.000000e+00> : vector<16x64xf32>
    %6 = tpu.matmul %4, %5, %cst {dimension_numbers = #tpu.dot_dimension_numbers<[1], [0], [0], [1], [0, 0, 1, 1], [], []>, precision = #tpu.contract_precision<fp32>} : vector<16x256xf32>, vector<256x64xf32>, vector<16x64xf32> -> vector<16x64xf32>
    %7 = arith.addf %3, %6 : vector<16x64xf32>
    %c0_6 = arith.constant 0 : index
    %c0_7 = arith.constant 0 : index
    %8 = vector.load %arg12[%c0_6, %c0_7] : memref<16x64xf32, #tpu.memory_space<vmem>>, vector<16x64xf32>
    tpu.vector_store %arg12[%c0_6, %c0_7], %7 {strides = array<i32>} : memref<16x64xf32, #tpu.memory_space<vmem>>, vector<16x64xf32>,
    %c2_i32 = arith.constant 2 : i32
    %9 = arith.cmpi eq, %arg0, %c2_i32 : i32
    %10 = arith.extui %9 : i1 to i32
    %c0_i32_8 = arith.constant 0 : i32
    %11 = arith.cmpi ne, %10, %c0_i32_8 : i32
    scf.if %11 {
      %c0_9 = arith.constant 0 : index
      %c0_10 = arith.constant 0 : index
      %12 = vector.load %arg12[%c0_9, %c0_10] : memref<16x64xf32, #tpu.memory_space<vmem>>, vector<16x64xf32>
      %c0_11 = arith.constant 0 : index
      %c0_12 = arith.constant 0 : index
      %13 = vector.load %arg3[%c0_11, %c0_12] : memref<1x64xf32, #tpu.memory_space<vmem>>, vector<1x64xf32>
      %14 = vector.broadcast %13 : vector<1x64xf32> to vector<16x64xf32>
      %15 = arith.addf %12, %14 : vector<16x64xf32>
      %16 = math.tanh %15 : vector<16x64xf32>
      %c0_13 = arith.constant 0 : index
      %c0_14 = arith.constant 0 : index
      %17 = vector.load %arg4[%c0_13, %c0_14] : memref<64x64xf32, #tpu.memory_space<vmem>>, vector<64x64xf32>
      %cst_15 = arith.constant dense<0.000000e+00> : vector<16x64xf32>
      %18 = tpu.matmul %16, %17, %cst_15 {dimension_numbers = #tpu.dot_dimension_numbers<[1], [0], [0], [1], [0, 0, 1, 1], [], []>, precision = #tpu.contract_precision<fp32>} : vector<16x64xf32>, vector<64x64xf32>, vector<16x64xf32> -> vector<16x64xf32>
      %c0_16 = arith.constant 0 : index
      %c0_17 = arith.constant 0 : index
      %19 = vector.load %arg5[%c0_16, %c0_17] : memref<1x64xf32, #tpu.memory_space<vmem>>, vector<1x64xf32>
      %20 = vector.broadcast %19 : vector<1x64xf32> to vector<16x64xf32>
      %21 = arith.addf %18, %20 : vector<16x64xf32>
      %22 = math.tanh %21 : vector<16x64xf32>
      %c0_18 = arith.constant 0 : index
      %c0_19 = arith.constant 0 : index
      %23 = vector.load %arg6[%c0_18, %c0_19] : memref<64x8xf32, #tpu.memory_space<vmem>>, vector<64x8xf32>
      %cst_20 = arith.constant dense<0.000000e+00> : vector<16x8xf32>
      %24 = tpu.matmul %22, %23, %cst_20 {dimension_numbers = #tpu.dot_dimension_numbers<[1], [0], [0], [1], [0, 0, 1, 1], [], []>, precision = #tpu.contract_precision<fp32>} : vector<16x64xf32>, vector<64x8xf32>, vector<16x8xf32> -> vector<16x8xf32>
      %c0_21 = arith.constant 0 : index
      %c0_22 = arith.constant 0 : index
      %25 = vector.load %arg7[%c0_21, %c0_22] : memref<1x8xf32, #tpu.memory_space<vmem>>, vector<1x8xf32>
      %26 = vector.broadcast %25 : vector<1x8xf32> to vector<16x8xf32>
      %27 = arith.addf %24, %26 : vector<16x8xf32>
      %c0_23 = arith.constant 0 : index
      %c0_24 = arith.constant 0 : index
      %28 = vector.load %arg8[%c0_23, %c0_24] : memref<64x8xf32, #tpu.memory_space<vmem>>, vector<64x8xf32>
      %cst_25 = arith.constant dense<0.000000e+00> : vector<16x8xf32>
      %29 = tpu.matmul %22, %28, %cst_25 {dimension_numbers = #tpu.dot_dimension_numbers<[1], [0], [0], [1], [0, 0, 1, 1], [], []>, precision = #tpu.contract_precision<fp32>} : vector<16x64xf32>, vector<64x8xf32>, vector<16x8xf32> -> vector<16x8xf32>
      %c0_26 = arith.constant 0 : index
      %c0_27 = arith.constant 0 : index
      %30 = vector.load %arg9[%c0_26, %c0_27] : memref<1x8xf32, #tpu.memory_space<vmem>>, vector<1x8xf32>
      %31 = vector.broadcast %30 : vector<1x8xf32> to vector<16x8xf32>
      %32 = arith.addf %29, %31 : vector<16x8xf32>
      %cst_28 = arith.constant 2.000000e+00 : f32
      %33 = vector.broadcast %cst_28 : f32 to vector<16x8xf32>
      %34 = arith.mulf %33, %32 : vector<16x8xf32>
      %cst_29 = arith.constant 1.000000e+00 : f32
      %35 = vector.broadcast %cst_29 : f32 to vector<16x8xf32>
      %36 = arith.addf %35, %34 : vector<16x8xf32>
      %37 = arith.mulf %27, %27 : vector<16x8xf32>
      %38 = arith.subf %36, %37 : vector<16x8xf32>
      %39 = math.exp %34 : vector<16x8xf32>
      %40 = arith.subf %38, %39 : vector<16x8xf32>
      %cst_30 = arith.constant dense<0.000000e+00> : vector<16xf32>
      %41 = vector.multi_reduction <add>, %40, %cst_30 [1] : vector<16x8xf32> to vector<16xf32>
      %42 = vector.shape_cast %41 : vector<16xf32> to vector<16x1xf32>
      %cst_31 = arith.constant -5.000000e-01 : f32
      %43 = vector.broadcast %cst_31 : f32 to vector<16x1xf32>
      %44 = arith.mulf %43, %42 : vector<16x1xf32>
      %cst_32 = arith.constant dense<0.000000e+00> : vector<1xf32>
      %45 = vector.multi_reduction <add>, %44, %cst_32 [0] : vector<16x1xf32> to vector<1xf32>
      %46 = vector.shape_cast %45 : vector<1xf32> to vector<1x1xf32>
      %cst_33 = arith.constant 1.600000e+01 : f32
      %47 = vector.broadcast %cst_33 : f32 to vector<1x1xf32>
      %48 = arith.divf %46, %47 : vector<1x1xf32>
      %c0_34 = arith.constant 0 : index
      %c0_35 = arith.constant 0 : index
      %49 = vector.load %arg11[%c0_34, %c0_35] : memref<1x1xf32, #tpu.memory_space<vmem>>, vector<1x1xf32>
      tpu.vector_store %arg11[%c0_34, %c0_35], %48 {strides = array<i32>} : memref<1x1xf32, #tpu.memory_space<vmem>>, vector<1x1xf32>,
      %cst_36 = arith.constant dense<0xFF800000> : vector<16xf32>
      %50 = vector.multi_reduction <maximumf>, %27, %cst_36 [1] : vector<16x8xf32> to vector<16xf32>
      %cst_37 = arith.constant 0xFF800000 : f32
      %51 = vector.broadcast %cst_37 : f32 to vector<16xf32>
      %52 = arith.maximumf %51, %50 : vector<16xf32>
      %53 = vector.shape_cast %52 : vector<16xf32> to vector<16x1xf32>
      %54 = vector.broadcast %53 : vector<16x1xf32> to vector<16x8xf32>
      %55 = arith.subf %27, %54 : vector<16x8xf32>
      %56 = math.exp %55 : vector<16x8xf32>
      %cst_38 = arith.constant dense<0.000000e+00> : vector<16xf32>
      %57 = vector.multi_reduction <add>, %56, %cst_38 [1] : vector<16x8xf32> to vector<16xf32>
      %58 = vector.shape_cast %57 : vector<16xf32> to vector<16x1xf32>
      %59 = vector.broadcast %58 : vector<16x1xf32> to vector<16x8xf32>
      %60 = arith.divf %56, %59 : vector<16x8xf32>
      %c0_39 = arith.constant 0 : index
      %c0_40 = arith.constant 0 : index
      %61 = vector.load %arg10[%c0_39, %c0_40] : memref<16x8xf32, #tpu.memory_space<vmem>>, vector<16x8xf32>
      tpu.vector_store %arg10[%c0_39, %c0_40], %60 {strides = array<i32>} : memref<16x8xf32, #tpu.memory_space<vmem>>, vector<16x8xf32>,
    } else {
    }
    return
  }
  func.func @transform_0(%arg0: i32) -> (i32, i32) {
    %c0_i32 = arith.constant 0 : i32
    %c0_i32_0 = arith.constant 0 : i32
    return %c0_i32, %arg0 : i32, i32
  }
  func.func @transform_1(%arg0: i32) -> (i32, i32) {
    %c0_i32 = arith.constant 0 : i32
    %c0_i32_0 = arith.constant 0 : i32
    return %arg0, %c0_i32 : i32, i32
  }
  func.func @transform_2(%arg0: i32) -> (i32, i32) {
    %c0_i32 = arith.constant 0 : i32
    %c0_i32_0 = arith.constant 0 : i32
    %c0_i32_1 = arith.constant 0 : i32
    return %c0_i32, %c0_i32_0 : i32, i32
  }
  func.func @transform_3(%arg0: i32) -> (i32, i32) {
    %c0_i32 = arith.constant 0 : i32
    %c0_i32_0 = arith.constant 0 : i32
    %c0_i32_1 = arith.constant 0 : i32
    return %c0_i32, %c0_i32_0 : i32, i32
  }
  func.func @transform_4(%arg0: i32) -> (i32, i32) {
    %c0_i32 = arith.constant 0 : i32
    %c0_i32_0 = arith.constant 0 : i32
    %c0_i32_1 = arith.constant 0 : i32
    return %c0_i32, %c0_i32_0 : i32, i32
  }
  func.func @transform_5(%arg0: i32) -> (i32, i32) {
    %c0_i32 = arith.constant 0 : i32
    %c0_i32_0 = arith.constant 0 : i32
    %c0_i32_1 = arith.constant 0 : i32
    return %c0_i32, %c0_i32_0 : i32, i32
  }
  func.func @transform_6(%arg0: i32) -> (i32, i32) {
    %c0_i32 = arith.constant 0 : i32
    %c0_i32_0 = arith.constant 0 : i32
    %c0_i32_1 = arith.constant 0 : i32
    return %c0_i32, %c0_i32_0 : i32, i32
  }
  func.func @transform_7(%arg0: i32) -> (i32, i32) {
    %c0_i32 = arith.constant 0 : i32
    %c0_i32_0 = arith.constant 0 : i32
    %c0_i32_1 = arith.constant 0 : i32
    return %c0_i32, %c0_i32_0 : i32, i32
  }
  func.func @transform_8(%arg0: i32) -> (i32, i32) {
    %c0_i32 = arith.constant 0 : i32
    %c0_i32_0 = arith.constant 0 : i32
    %c0_i32_1 = arith.constant 0 : i32
    return %c0_i32, %c0_i32_0 : i32, i32
  }
  func.func @transform_9(%arg0: i32) -> (i32, i32) {
    %c0_i32 = arith.constant 0 : i32
    %c0_i32_0 = arith.constant 0 : i32
    %c0_i32_1 = arith.constant 0 : i32
    return %c0_i32, %c0_i32_0 : i32, i32
  }
  func.func @transform_10(%arg0: i32) -> (i32, i32) {
    %c0_i32 = arith.constant 0 : i32
    %c0_i32_0 = arith.constant 0 : i32
    %c0_i32_1 = arith.constant 0 : i32
    return %c0_i32, %c0_i32_0 : i32, i32
  }
}

</mosaic_0001>

<llo_original>
// kernel: tpu_custom_call.1
$region0: #{tpu_custom_call.1}
  #allocation0 [shape = 'u32[]', space=smem, size = 0x4, offset = 0x4, fixed_abs, tag = 'smem constant byte address 0x4 - core index']
  #allocation1 [shape = 'u32[72,128]{1,0:T(1,128)}', space=vmem, size = 0x9000, scoped, tag = 'internal scratch']
  #allocation2 [shape = 'f32[16,64]{1,0:T(8,128)}', space=vmem, size = 0x2000, scoped, tag = 'scratch operand']
  %s0 = inlined_call_operand.vmem [shape: f32[16,768], index: 0, kind: input, shape index: {}]
  %s1 = inlined_call_operand.vmem [shape: f32[768,64], index: 1, kind: input, shape index: {}]
  %s2 = inlined_call_operand.vmem [shape: f32[1,64], index: 2, kind: input, shape index: {}]
  %s3 = inlined_call_operand.vmem [shape: f32[64,64], index: 3, kind: input, shape index: {}]
  %s4 = inlined_call_operand.vmem [shape: f32[1,64], index: 4, kind: input, shape index: {}]
  %s5 = inlined_call_operand.vmem [shape: f32[64,8], index: 5, kind: input, shape index: {}]
  %s6 = inlined_call_operand.vmem [shape: f32[1,8], index: 6, kind: input, shape index: {}]
  %s7 = inlined_call_operand.vmem [shape: f32[64,8], index: 7, kind: input, shape index: {}]
  %s8 = inlined_call_operand.vmem [shape: f32[1,8], index: 8, kind: input, shape index: {}]
  %s9 = inlined_call_operand.vmem [shape: f32[16,8], index: 9, kind: output, shape index: {0}]
  %s10 = inlined_call_operand.hbm [shape: f32[1,1], index: 10, kind: output, shape index: {1}]
  %11 = xla_tuple %s9, %s10
  %s12 = sld [smem:[#allocation0]]
  $region108: #{tpu_custom_call.1} parent=0
    _
  %s14 = ssub.s32 1, %s12
  %s15 = scalar_select 0, %s14, %s12
  $region1: #{tpu_custom_call.1} parent=0
    #allocation3 [shape = 'u8[32768]{0}', space=vmem, size = 0x8000, scoped, tag = 'input window, operand 0']
    #allocation4 [shape = 'u8[512]{0}', space=vmem, size = 0x400, scoped, tag = 'output window, operand 1, single buffered']
    #allocation5 [shape = 's32[2]{0}', space=sflag, size = 0x8, scoped, tag = 'scoped memory for tpu_custom_call.1']
    %16 = vsyncpa [#allocation5], 0
    loop: start=0, step=1, limit=5
    $region2: #{tpu_custom_call.1} parent=1 // loop_pre_header
      _
    $region3: #{tpu_custom_call.1} parent=1 // loop_header
      %s18 = sphi 0, %s22
      %p19 = scmp.ge.s32.totalorder %s18, 5
      %s28 = sphi 0, %s30
      %s31 = sphi 0, %s28
      %s32 = sphi 0, %s31
      %s48 = sphi 0, %s32
      %s54 = sphi 0, %s56
      %s57 = sphi 0, %s54
      %s58 = sphi 0, %s57
      %s74 = sphi 0, %s58
      %s78 = sphi 0, %s78
      %s80 = sphi 0, %s78
      %s81 = sphi 0, %s80
      %s95 = sphi 0, %s81
      %s99 = sphi 0, %s99
      %s101 = sphi 0, %s99
      %s102 = sphi 0, %s101
      %s116 = sphi 0, %s102
      %s120 = sphi 0, %s120
      %s122 = sphi 0, %s120
      %s123 = sphi 0, %s122
      %s137 = sphi 0, %s123
      %s141 = sphi 0, %s141
      %s143 = sphi 0, %s141
      %s144 = sphi 0, %s143
      %s158 = sphi 0, %s144
      %s162 = sphi 0, %s162
      %s164 = sphi 0, %s162
      %s165 = sphi 0, %s164
      %s179 = sphi 0, %s165
      %s183 = sphi 0, %s183
      %s185 = sphi 0, %s183
      %s186 = sphi 0, %s185
      %s200 = sphi 0, %s186
      %s204 = sphi 0, %s204
      %s206 = sphi 0, %s204
      %s207 = sphi 0, %s206
      %s221 = sphi 0, %s207
      %s225 = sphi 0, %s225
      %s227 = sphi 0, %s225
      %s228 = sphi 0, %s227
      %s242 = sphi 0, %s228
      %s246 = sphi 0, %s246
      %s248 = sphi 0, %s246
      %s249 = sphi 0, %s248
      %s263 = sphi 0, %s249
    $region4: #{tpu_custom_call.1} parent=1 // loop_header_branch
      %21 = sbr.rel (%p19) target = $region8
    $region5: #{tpu_custom_call.1} parent=1 // loop_body
      %s23 = ssub.s32 %s18, 1
      %s24 = ssub.s32 %s18, 2
      %s25 = sadd.s32 %s18, 1
      %s26 = ssub.s32 %s18, %s25
      %p27 = scmp.eq.s32.totalorder %s26, 0
      %s29 = sadd.s32 %s28, 1
      %s30 = scalar_select %p27, %s28, %s29
      %p33 = pneg %p27
      %p34 = scmp.eq.s32.totalorder %s18, 2
      %p35 = por %p33, %p34
      %p36 = scmp.ne.s32.totalorder %s28, %s31
      %p37 = scmp.eq.s32.totalorder %s18, 0
      %p38 = por %p36, %p37
      %p39 = scmp.ne.s32.totalorder %s28, %s31
      %p40 = scmp.eq.s32.totalorder %s23, 2
      %p41 = por %p39, %p40
      %p42 = scmp.ne.s32.totalorder %s31, %s32
      %p43 = scmp.eq.s32.totalorder %s23, 0
      %p44 = por %p42, %p43
      %p45 = scmp.ne.s32.totalorder %s31, %s32
      %p46 = scmp.eq.s32.totalorder %s24, 2
      %p47 = por %p45, %p46
      %p49 = scmp.ne.s32.totalorder %s32, %s48
      %p50 = scmp.eq.s32.totalorder %s24, 0
      %p51 = por %p49, %p50
      %s52 = ssub.s32 %s18, %s25
      %p53 = scmp.eq.s32.totalorder %s52, 0
      %s55 = sadd.s32 %s54, 1
      %s56 = scalar_select %p53, %s54, %s55
      %p59 = pneg %p53
      %p60 = scmp.eq.s32.totalorder %s18, 2
      %p61 = por %p59, %p60
      %p62 = scmp.ne.s32.totalorder %s54, %s57
      %p63 = scmp.eq.s32.totalorder %s18, 0
      %p64 = por %p62, %p63
      %p65 = scmp.ne.s32.totalorder %s54, %s57
      %p66 = scmp.eq.s32.totalorder %s23, 2
      %p67 = por %p65, %p66
      %p68 = scmp.ne.s32.totalorder %s57, %s58
      %p69 = scmp.eq.s32.totalorder %s23, 0
      %p70 = por %p68, %p69
      %p71 = scmp.ne.s32.totalorder %s57, %s58
      %p72 = scmp.eq.s32.totalorder %s24, 2
      %p73 = por %p71, %p72
      %p75 = scmp.ne.s32.totalorder %s58, %s74
      %p76 = scmp.eq.s32.totalorder %s24, 0
      %p77 = por %p75, %p76
      %s79 = sadd.s32 %s78, 1
      %p82 = scmp.eq.s32.totalorder %s18, 2
      %p83 = scmp.ne.s32.totalorder %s78, %s80
      %p84 = scmp.eq.s32.totalorder %s18, 0
      %p85 = por %p83, %p84
      %p86 = scmp.ne.s32.totalorder %s78, %s80
      %p87 = scmp.eq.s32.totalorder %s23, 2
      %p88 = por %p86, %p87
      %p89 = scmp.ne.s32.totalorder %s80, %s81
      %p90 = scmp.eq.s32.totalorder %s23, 0
      %p91 = por %p89, %p90
      %p92 = scmp.ne.s32.totalorder %s80, %s81
      %p93 = scmp.eq.s32.totalorder %s24, 2
      %p94 = por %p92, %p93
      %p96 = scmp.ne.s32.totalorder %s81, %s95
      %p97 = scmp.eq.s32.totalorder %s24, 0
      %p98 = por %p96, %p97
      %s100 = sadd.s32 %s99, 1
      %p103 = scmp.eq.s32.totalorder %s18, 2
      %p104 = scmp.ne.s32.totalorder %s99, %s101
      %p105 = scmp.eq.s32.totalorder %s18, 0
      %p106 = por %p104, %p105
      %p107 = scmp.ne.s32.totalorder %s99, %s101
      %p108 = scmp.eq.s32.totalorder %s23, 2
      %p109 = por %p107, %p108
      %p110 = scmp.ne.s32.totalorder %s101, %s102
      %p111 = scmp.eq.s32.totalorder %s23, 0
      %p112 = por %p110, %p111
      %p113 = scmp.ne.s32.totalorder %s101, %s102
      %p114 = scmp.eq.s32.totalorder %s24, 2
      %p115 = por %p113, %p114
      %p117 = scmp.ne.s32.totalorder %s102, %s116
      %p118 = scmp.eq.s32.totalorder %s24, 0
      %p119 = por %p117, %p118
      %s121 = sadd.s32 %s120, 1
      %p124 = scmp.eq.s32.totalorder %s18, 2
      %p125 = scmp.ne.s32.totalorder %s120, %s122
      %p126 = scmp.eq.s32.totalorder %s18, 0
      %p127 = por %p125, %p126
      %p128 = scmp.ne.s32.totalorder %s120, %s122
      %p129 = scmp.eq.s32.totalorder %s23, 2
      %p130 = por %p128, %p129
      %p131 = scmp.ne.s32.totalorder %s122, %s123
      %p132 = scmp.eq.s32.totalorder %s23, 0
      %p133 = por %p131, %p132
      %p134 = scmp.ne.s32.totalorder %s122, %s123
      %p135 = scmp.eq.s32.totalorder %s24, 2
      %p136 = por %p134, %p135
      %p138 = scmp.ne.s32.totalorder %s123, %s137
      %p139 = scmp.eq.s32.totalorder %s24, 0
      %p140 = por %p138, %p139
      %s142 = sadd.s32 %s141, 1
      %p145 = scmp.eq.s32.totalorder %s18, 2
      %p146 = scmp.ne.s32.totalorder %s141, %s143
      %p147 = scmp.eq.s32.totalorder %s18, 0
      %p148 = por %p146, %p147
      %p149 = scmp.ne.s32.totalorder %s141, %s143
      %p150 = scmp.eq.s32.totalorder %s23, 2
      %p151 = por %p149, %p150
      %p152 = scmp.ne.s32.totalorder %s143, %s144
      %p153 = scmp.eq.s32.totalorder %s23, 0
      %p154 = por %p152, %p153
      %p155 = scmp.ne.s32.totalorder %s143, %s144
      %p156 = scmp.eq.s32.totalorder %s24, 2
      %p157 = por %p155, %p156
      %p159 = scmp.ne.s32.totalorder %s144, %s158
      %p160 = scmp.eq.s32.totalorder %s24, 0
      %p161 = por %p159, %p160
      %s163 = sadd.s32 %s162, 1
      %p166 = scmp.eq.s32.totalorder %s18, 2
      %p167 = scmp.ne.s32.totalorder %s162, %s164
      %p168 = scmp.eq.s32.totalorder %s18, 0
      %p169 = por %p167, %p168
      %p170 = scmp.ne.s32.totalorder %s162, %s164
      %p171 = scmp.eq.s32.totalorder %s23, 2
      %p172 = por %p170, %p171
      %p173 = scmp.ne.s32.totalorder %s164, %s165
      %p174 = scmp.eq.s32.totalorder %s23, 0
      %p175 = por %p173, %p174
      %p176 = scmp.ne.s32.totalorder %s164, %s165
      %p177 = scmp.eq.s32.totalorder %s24, 2
      %p178 = por %p176, %p177
      %p180 = scmp.ne.s32.totalorder %s165, %s179
      %p181 = scmp.eq.s32.totalorder %s24, 0
      %p182 = por %p180, %p181
      %s184 = sadd.s32 %s183, 1
      %p187 = scmp.eq.s32.totalorder %s18, 2
      %p188 = scmp.ne.s32.totalorder %s183, %s185
      %p189 = scmp.eq.s32.totalorder %s18, 0
      %p190 = por %p188, %p189
      %p191 = scmp.ne.s32.totalorder %s183, %s185
      %p192 = scmp.eq.s32.totalorder %s23, 2
      %p193 = por %p191, %p192
      %p194 = scmp.ne.s32.totalorder %s185, %s186
      %p195 = scmp.eq.s32.totalorder %s23, 0
      %p196 = por %p194, %p195
      %p197 = scmp.ne.s32.totalorder %s185, %s186
      %p198 = scmp.eq.s32.totalorder %s24, 2
      %p199 = por %p197, %p198
      %p201 = scmp.ne.s32.totalorder %s186, %s200
      %p202 = scmp.eq.s32.totalorder %s24, 0
      %p203 = por %p201, %p202
      %s205 = sadd.s32 %s204, 1
      %p208 = scmp.eq.s32.totalorder %s18, 2
      %p209 = scmp.ne.s32.totalorder %s204, %s206
      %p210 = scmp.eq.s32.totalorder %s18, 0
      %p211 = por %p209, %p210
      %p212 = scmp.ne.s32.totalorder %s204, %s206
      %p213 = scmp.eq.s32.totalorder %s23, 2
      %p214 = por %p212, %p213
      %p215 = scmp.ne.s32.totalorder %s206, %s207
      %p216 = scmp.eq.s32.totalorder %s23, 0
      %p217 = por %p215, %p216
      %p218 = scmp.ne.s32.totalorder %s206, %s207
      %p219 = scmp.eq.s32.totalorder %s24, 2
      %p220 = por %p218, %p219
      %p222 = scmp.ne.s32.totalorder %s207, %s221
      %p223 = scmp.eq.s32.totalorder %s24, 0
      %p224 = por %p222, %p223
      %s226 = sadd.s32 %s225, 1
      %p229 = scmp.eq.s32.totalorder %s18, 2
      %p230 = scmp.ne.s32.totalorder %s225, %s227
      %p231 = scmp.eq.s32.totalorder %s18, 0
      %p232 = por %p230, %p231
      %p233 = scmp.ne.s32.totalorder %s225, %s227
      %p234 = scmp.eq.s32.totalorder %s23, 2
      %p235 = por %p233, %p234
      %p236 = scmp.ne.s32.totalorder %s227, %s228
      %p237 = scmp.eq.s32.totalorder %s23, 0
      %p238 = por %p236, %p237
      %p239 = scmp.ne.s32.totalorder %s227, %s228
      %p240 = scmp.eq.s32.totalorder %s24, 2
      %p241 = por %p239, %p240
      %p243 = scmp.ne.s32.totalorder %s228, %s242
      %p244 = scmp.eq.s32.totalorder %s24, 0
      %p245 = por %p243, %p244
      %s247 = sadd.s32 %s246, 1
      %p250 = scmp.eq.s32.totalorder %s18, 2
      %p251 = scmp.ne.s32.totalorder %s246, %s248
      %p252 = scmp.eq.s32.totalorder %s18, 0
      %p253 = por %p251, %p252
      %p254 = scmp.ne.s32.totalorder %s246, %s248
      %p255 = scmp.eq.s32.totalorder %s23, 2
      %p256 = por %p254, %p255
      %p257 = scmp.ne.s32.totalorder %s248, %s249
      %p258 = scmp.eq.s32.totalorder %s23, 0
      %p259 = por %p257, %p258
      %p260 = scmp.ne.s32.totalorder %s248, %s249
      %p261 = scmp.eq.s32.totalorder %s24, 2
      %p262 = por %p260, %p261
      %p264 = scmp.ne.s32.totalorder %s249, %s263
      %p265 = scmp.eq.s32.totalorder %s24, 0
      %p266 = por %p264, %p265
      %p267 = scmp.le.s32.totalorder 1, %s18
      %p268 = scmp.lt.s32.totalorder %s18, 4
      %p269 = pnand %p267, %p268
      %p270 = pneg %p269
      // Predicated region
      $region9: #{tpu_custom_call.1} parent=5 // pred_check
        _
      $region10: #{tpu_custom_call.1} parent=5 // pred_check_branch
        %272 = sbr.rel (%p269) target = $region12
      $region11: #{tpu_custom_call.1} parent=5 // pred_region
        %s273 = ssub.s32 %s18, 1
        // Predicated region
        $region13: #{tpu_custom_call.1} parent=11 // pred_check
          %p274 = pneg %p91
        $region14: #{tpu_custom_call.1} parent=11 // pred_check_branch
          %276 = sbr.rel (%p274) target = $region16
        $region15: #{tpu_custom_call.1} parent=11 // pred_region
          _
        $region16: #{tpu_custom_call.1} parent=11 // pred_fallthru
          _
        // Predicated region
        $region17: #{tpu_custom_call.1} parent=11 // pred_check
          %p277 = pneg %p112
        $region18: #{tpu_custom_call.1} parent=11 // pred_check_branch
          %279 = sbr.rel (%p277) target = $region20
        $region19: #{tpu_custom_call.1} parent=11 // pred_region
          _
        $region20: #{tpu_custom_call.1} parent=11 // pred_fallthru
          _
        // Predicated region
        $region21: #{tpu_custom_call.1} parent=11 // pred_check
          %p280 = pneg %p133
        $region22: #{tpu_custom_call.1} parent=11 // pred_check_branch
          %282 = sbr.rel (%p280) target = $region24
        $region23: #{tpu_custom_call.1} parent=11 // pred_region
          _
        $region24: #{tpu_custom_call.1} parent=11 // pred_fallthru
          _
        // Predicated region
        $region25: #{tpu_custom_call.1} parent=11 // pred_check
          %p283 = pneg %p154
        $region26: #{tpu_custom_call.1} parent=11 // pred_check_branch
          %285 = sbr.rel (%p283) target = $region28
        $region27: #{tpu_custom_call.1} parent=11 // pred_region
          _
        $region28: #{tpu_custom_call.1} parent=11 // pred_fallthru
          _
        // Predicated region
        $region29: #{tpu_custom_call.1} parent=11 // pred_check
          %p286 = pneg %p175
        $region30: #{tpu_custom_call.1} parent=11 // pred_check_branch
          %288 = sbr.rel (%p286) target = $region32
        $region31: #{tpu_custom_call.1} parent=11 // pred_region
          _
        $region32: #{tpu_custom_call.1} parent=11 // pred_fallthru
          _
        // Predicated region
        $region33: #{tpu_custom_call.1} parent=11 // pred_check
          %p289 = pneg %p196
        $region34: #{tpu_custom_call.1} parent=11 // pred_check_branch
          %291 = sbr.rel (%p289) target = $region36
        $region35: #{tpu_custom_call.1} parent=11 // pred_region
          _
        $region36: #{tpu_custom_call.1} parent=11 // pred_fallthru
          _
        // Predicated region
        $region37: #{tpu_custom_call.1} parent=11 // pred_check
          %p292 = pneg %p217
        $region38: #{tpu_custom_call.1} parent=11 // pred_check_branch
          %294 = sbr.rel (%p292) target = $region40
        $region39: #{tpu_custom_call.1} parent=11 // pred_region
          _
        $region40: #{tpu_custom_call.1} parent=11 // pred_fallthru
          _
      $region12: #{tpu_custom_call.1} parent=5 // pred_fallthru
        _
      %p295 = scmp.lt.s32.totalorder %s18, 3
      // Predicated region
      $region41: #{tpu_custom_call.1} parent=5 // pred_check
        %p296 = pneg %p295
      $region42: #{tpu_custom_call.1} parent=5 // pred_check_branch
        %298 = sbr.rel (%p296) target = $region44
      $region43: #{tpu_custom_call.1} parent=5 // pred_region
        // Predicated region
        $region45: #{tpu_custom_call.1} parent=43 // pred_check
          %p299 = pneg %p38
        $region46: #{tpu_custom_call.1} parent=43 // pred_check_branch
          %301 = sbr.rel (%p299) target = $region48
        $region47: #{tpu_custom_call.1} parent=43 // pred_region
          %s302 = sand.u32 %s28, 1
          %s303 = sand.u32 %s28, 1
          %s304 = smul.addr %s303, 32
          %s305 = scalar_lea.vmem [#allocation3], %s304
          %s306 = smul.u32 2, %s18
          %s307 = smul.addr %s306, 8
          %s308 = scalar_lea.vmem %s0, %s307
          // Predicated region
          $region49: #{tpu_custom_call.1} parent=47 // pred_check
            _
          $region50: #{tpu_custom_call.1} parent=47 // pred_check_branch
            %310 = sbr.rel (0) target = $region52
          $region51: #{tpu_custom_call.1} parent=47 // pred_region
            // Predicated region
            $region53: #{tpu_custom_call.1} parent=51 // pred_check
              _
            $region54: #{tpu_custom_call.1} parent=51 // pred_check_branch
              %312 = sbr.rel (0) target = $region56
            $region55: #{tpu_custom_call.1} parent=51 // pred_region
              loop: start=0, step=1, limit=1
              $region57: #{tpu_custom_call.1} parent=55 // loop_pre_header
                _
              $region58: #{tpu_custom_call.1} parent=55 // loop_header
                %s314 = sphi 0, %s318
                %p315 = scmp.ge.s32.totalorder %s314, 1
                %s319 = sphi %s308, %s308
                %s320 = sphi %s305, %s305
              $region59: #{tpu_custom_call.1} parent=55 // loop_header_branch
                %317 = sbr.rel (%p315) target = $region63
              $region60: #{tpu_custom_call.1} parent=55 // loop_body
                %v321 = vld [vmem:[%s319] sm:$0xff]
                %322 = vst [vmem:[%s320] sm:$0xff] %v321
                %v323 = vld [vmem:[%s319 + $0x8] sm:$0xff]
                %324 = vst [vmem:[%s320 + $0x8] sm:$0xff] %v323
                %v325 = vld [vmem:[%s319 + $0x30] sm:$0xff]
                %326 = vst [vmem:[%s320 + $0x10] sm:$0xff] %v325
                %v327 = vld [vmem:[%s319 + $0x38] sm:$0xff]
                %328 = vst [vmem:[%s320 + $0x18] sm:$0xff] %v327
              $region61: #{tpu_custom_call.1} parent=55 // loop_footer
                %s318 = sadd.s32 1, %s314
              $region62: #{tpu_custom_call.1} parent=55 // loop_footer_branch
                %313 = sbr.rel target = $region58
              $region63: #{tpu_custom_call.1} parent=55 // loop_exit
                _
            $region56: #{tpu_custom_call.1} parent=51 // pred_fallthru
              _
            // Predicated region
            $region64: #{tpu_custom_call.1} parent=51 // pred_check
              _
            $region65: #{tpu_custom_call.1} parent=51 // pred_check_branch
              %330 = sbr.rel target = $region67
            $region66: #{tpu_custom_call.1} parent=51 // pred_region
              _
            $region67: #{tpu_custom_call.1} parent=51 // pred_fallthru
              _
          $region52: #{tpu_custom_call.1} parent=47 // pred_fallthru
            _
          %331 = vnop
        $region48: #{tpu_custom_call.1} parent=43 // pred_fallthru
          _
        // Predicated region
        $region68: #{tpu_custom_call.1} parent=43 // pred_check
          %p332 = pneg %p64
        $region69: #{tpu_custom_call.1} parent=43 // pred_check_branch
          %334 = sbr.rel (%p332) target = $region71
        $region70: #{tpu_custom_call.1} parent=43 // pred_region
          %s335 = smul.u32 32, %s18
          %p336 = scmp.lt.s32.totalorder %s335, 95
          %s337 = scalar_select %p336, %s335, 95
          %s338 = smul.addr %s337, 8
          %s339 = scalar_lea.vmem %s1, %s338
          %s340 = smul.u32 32, %s18
        $region71: #{tpu_custom_call.1} parent=43 // pred_fallthru
          _
      $region44: #{tpu_custom_call.1} parent=5 // pred_fallthru
        _
      %p341 = scmp.le.s32.totalorder 1, %s18
      %p342 = scmp.lt.s32.totalorder %s18, 4
      %p343 = pnand %p341, %p342
      %p344 = pneg %p343
      // Predicated region
      $region72: #{tpu_custom_call.1} parent=5 // pred_check
        _
      $region73: #{tpu_custom_call.1} parent=5 // pred_check_branch
        %346 = sbr.rel (%p343) target = $region75
      $region74: #{tpu_custom_call.1} parent=5 // pred_region
        %s347 = ssub.s32 %s18, 1
        %s348 = sand.u32 %s31, 1
        %s349 = sand.u32 %s31, 1
        %s350 = smul.addr %s349, 32
        %s351 = scalar_lea.vmem [#allocation3], %s350
        // Predicated region
        $region76: #{tpu_custom_call.1} parent=74 // pred_check
          %p352 = pneg %p44
        $region77: #{tpu_custom_call.1} parent=74 // pred_check_branch
          %354 = sbr.rel (%p352) target = $region79
        $region78: #{tpu_custom_call.1} parent=74 // pred_region
          _
        $region79: #{tpu_custom_call.1} parent=74 // pred_fallthru
          _
        %s355 = sand.u32 %s31, 1
        %s356 = sand.u32 %s31, 1
        %s357 = smul.addr %s356, 32
        %s358 = scalar_lea.vmem [#allocation3], %s357
        %p359 = pneg %p44
        %p360 = pneg %p41
        %s361 = smul.u32 32, %s23
        %p362 = scmp.lt.s32.totalorder %s361, 95
        %s363 = scalar_select %p362, %s361, 95
        %s364 = smul.addr %s363, 8
        %s365 = scalar_lea.vmem %s1, %s364
        %p366 = pneg %p70
        %p367 = pneg %p67
        %p368 = pneg %p91
        %p369 = pneg %p88
        %p370 = pneg %p112
        %p371 = pneg %p109
        %p372 = pneg %p133
        %p373 = pneg %p130
        %p374 = pneg %p154
        %p375 = pneg %p151
        %p376 = pneg %p175
        %p377 = pneg %p172
        %p378 = pneg %p196
        %p379 = pneg %p193
        %p380 = pneg %p217
        %p381 = pneg %p214
        %p382 = pneg %p238
        %p383 = pneg %p235
        %p384 = pneg %p259
        %p385 = pneg %p256
        %s386 = smul.u32 2, %s23
        %s387 = smul.u32 32, %s23
        %p388 = scmp.lt.s32.totalorder %s387, 95
        %s389 = scalar_select %p388, %s387, 95
        %s390 = smul.addr %s389, 8
        %s391 = scalar_lea.vmem %s1, %s390
        %s392 = smul.u32 32, %s23
        %p393 = scmp.eq.s32.totalorder %s23, 0
        // Predicated region
        $region80: #{tpu_custom_call.1} parent=74 // pred_check
          %p394 = pneg %p393
        $region81: #{tpu_custom_call.1} parent=74 // pred_check_branch
          %396 = sbr.rel (%p394) target = $region83
        $region82: #{tpu_custom_call.1} parent=74 // pred_region
          %vm397 = vcmask 523264
          %398 = vst.msk [vmem:[#allocation2] sm:$0xff] %vm397, 0.0
          %399 = vst.msk [vmem:[#allocation2 + $0x8] sm:$0xff] %vm397, 0.0
        $region83: #{tpu_custom_call.1} parent=74 // pred_fallthru
          _
        %v400 = vld [vmem:[#allocation2] sm:$0xff]
        %v401 = vld [vmem:[#allocation2 + $0x8] sm:$0xff]
        %v402 = vld [vmem:[%s351] sm:$0xff]
        %v403 = vld [vmem:[%s351 + $0x8] sm:$0xff]
        %v404 = vld [vmem:[%s351 + $0x10] sm:$0xff]
        %v405 = vld [vmem:[%s351 + $0x18] sm:$0xff]
        %v406 = vld [vmem:[%s391] sm:$0xff]
        %v407 = vld [vmem:[%s391 + $0x8] sm:$0xff]
        %v408 = vld [vmem:[%s391 + $0x10] sm:$0xff]
        %v409 = vld [vmem:[%s391 + $0x18] sm:$0xff]
        %v410 = vld [vmem:[%s391 + $0x20] sm:$0xff]
        %v411 = vld [vmem:[%s391 + $0x28] sm:$0xff]
        %v412 = vld [vmem:[%s391 + $0x30] sm:$0xff]
        %v413 = vld [vmem:[%s391 + $0x38] sm:$0xff]
        %v414 = vld [vmem:[%s391 + $0x40] sm:$0xff]
        %v415 = vld [vmem:[%s391 + $0x48] sm:$0xff]
        %v416 = vld [vmem:[%s391 + $0x50] sm:$0xff]
        %v417 = vld [vmem:[%s391 + $0x58] sm:$0xff]
        %v418 = vld [vmem:[%s391 + $0x60] sm:$0xff]
        %v419 = vld [vmem:[%s391 + $0x68] sm:$0xff]
        %v420 = vld [vmem:[%s391 + $0x70] sm:$0xff]
        %v421 = vld [vmem:[%s391 + $0x78] sm:$0xff]
        %v422 = vld [vmem:[%s391 + $0x80] sm:$0xff]
        %v423 = vld [vmem:[%s391 + $0x88] sm:$0xff]
        %v424 = vld [vmem:[%s391 + $0x90] sm:$0xff]
        %v425 = vld [vmem:[%s391 + $0x98] sm:$0xff]
        %v426 = vld [vmem:[%s391 + $0xa0] sm:$0xff]
        %v427 = vld [vmem:[%s391 + $0xa8] sm:$0xff]
        %v428 = vld [vmem:[%s391 + $0xb0] sm:$0xff]
        %v429 = vld [vmem:[%s391 + $0xb8] sm:$0xff]
        %v430 = vld [vmem:[%s391 + $0xc0] sm:$0xff]
        %v431 = vld [vmem:[%s391 + $0xc8] sm:$0xff]
        %v432 = vld [vmem:[%s391 + $0xd0] sm:$0xff]
        %v433 = vld [vmem:[%s391 + $0xd8] sm:$0xff]
        %v434 = vld [vmem:[%s391 + $0xe0] sm:$0xff]
        %v435 = vld [vmem:[%s391 + $0xe8] sm:$0xff]
        %v436 = vld [vmem:[%s391 + $0xf0] sm:$0xff]
        %v437 = vld [vmem:[%s391 + $0xf8] sm:$0xff]
        %v438 = vand.u32 %v421, 4294901760
        %439 = vmatpush.msra.mxu0 %v438
        %v440 = vand.u32 %v420, 4294901760
        %441 = vmatpush.msra.mxu0 %v440
        %v442 = vand.u32 %v419, 4294901760
        %443 = vmatpush.msra.mxu0 %v442
        %v444 = vand.u32 %v418, 4294901760
        %445 = vmatpush.msra.mxu0 %v444
        %v446 = vand.u32 %v417, 4294901760
        %447 = vmatpush.msra.mxu0 %v446
        %v448 = vand.u32 %v416, 4294901760
        %449 = vmatpush.msra.mxu0 %v448
        %v450 = vand.u32 %v415, 4294901760
        %451 = vmatpush.msra.mxu0 %v450
        %v452 = vand.u32 %v414, 4294901760
        %453 = vmatpush.msra.mxu0 %v452
        %v454 = vand.u32 %v413, 4294901760
        %455 = vmatpush.msra.mxu0 %v454
        %v456 = vand.u32 %v412, 4294901760
        %457 = vmatpush.msra.mxu0 %v456
        %v458 = vand.u32 %v411, 4294901760
        %459 = vmatpush.msra.mxu0 %v458
        %v460 = vand.u32 %v410, 4294901760
        %461 = vmatpush.msra.mxu0 %v460
        %v462 = vand.u32 %v409, 4294901760
        %463 = vmatpush.msra.mxu0 %v462
        %v464 = vand.u32 %v408, 4294901760
        %465 = vmatpush.msra.mxu0 %v464
        %v466 = vand.u32 %v407, 4294901760
        %467 = vmatpush.msra.mxu0 %v466
        %v468 = vand.u32 %v406, 4294901760
        %469 = vmatpush.msra.mxu0 %v468
        %v470 = vand.u32 %v402, 4294901760
        %v471 = vsub.f32 %v402, %v470
        %v472 = vand.u32 %v471, 4294901760
        %v473 = vsub.f32 %v471, %v472
        %v474 = vand.u32 %v473, 4294901760
        %475 = vmatmul.f32.gmra.mxu0 %v474
        %v476 = vpop.f32.mrf.mxu0
        %v477 = vadd.f32 0.0, %v476
        %v478 = vand.u32 %v404, 4294901760
        %v479 = vsub.f32 %v404, %v478
        %v480 = vand.u32 %v479, 4294901760
        %v481 = vsub.f32 %v479, %v480
        %v482 = vand.u32 %v481, 4294901760
        %483 = vmatmul.f32.gmra.mxu0 %v482
        %v484 = vpop.f32.mrf.mxu0
        %v485 = vadd.f32 0.0, %v484
        %486 = vdwg.mxu0
        %v487 = vand.u32 %v421, 4294901760
        %v488 = vsub.f32 %v421, %v487
        %v489 = vand.u32 %v488, 4294901760
        %v490 = vsub.f32 %v488, %v489
        %v491 = vand.u32 %v490, 4294901760
        %492 = vmatpush.msra.mxu0 %v491
        %v493 = vand.u32 %v420, 4294901760
        %v494 = vsub.f32 %v420, %v493
        %v495 = vand.u32 %v494, 4294901760
        %v496 = vsub.f32 %v494, %v495
        %v497 = vand.u32 %v496, 4294901760
        %498 = vmatpush.msra.mxu0 %v497
        %v499 = vand.u32 %v419, 4294901760
        %v500 = vsub.f32 %v419, %v499
        %v501 = vand.u32 %v500, 4294901760
        %v502 = vsub.f32 %v500, %v501
        %v503 = vand.u32 %v502, 4294901760
        %504 = vmatpush.msra.mxu0 %v503
        %v505 = vand.u32 %v418, 4294901760
        %v506 = vsub.f32 %v418, %v505
        %v507 = vand.u32 %v506, 4294901760
        %v508 = vsub.f32 %v506, %v507
        %v509 = vand.u32 %v508, 4294901760
        %510 = vmatpush.msra.mxu0 %v509
        %v511 = vand.u32 %v417, 4294901760
        %v512 = vsub.f32 %v417, %v511
        %v513 = vand.u32 %v512, 4294901760
        %v514 = vsub.f32 %v512, %v513
        %v515 = vand.u32 %v514, 4294901760
        %516 = vmatpush.msra.mxu0 %v515
        %v517 = vand.u32 %v416, 4294901760
        %v518 = vsub.f32 %v416, %v517
        %v519 = vand.u32 %v518, 4294901760
        %v520 = vsub.f32 %v518, %v519
        %v521 = vand.u32 %v520, 4294901760
        %522 = vmatpush.msra.mxu0 %v521
        %v523 = vand.u32 %v415, 4294901760
        %v524 = vsub.f32 %v415, %v523
        %v525 = vand.u32 %v524, 4294901760
        %v526 = vsub.f32 %v524, %v525
        %v527 = vand.u32 %v526, 4294901760
        %528 = vmatpush.msra.mxu0 %v527
        %v529 = vand.u32 %v414, 4294901760
        %v530 = vsub.f32 %v414, %v529
        %v531 = vand.u32 %v530, 4294901760
        %v532 = vsub.f32 %v530, %v531
        %v533 = vand.u32 %v532, 4294901760
        %534 = vmatpush.msra.mxu0 %v533
        %v535 = vand.u32 %v413, 4294901760
        %v536 = vsub.f32 %v413, %v535
        %v537 = vand.u32 %v536, 4294901760
        %v538 = vsub.f32 %v536, %v537
        %v539 = vand.u32 %v538, 4294901760
        %540 = vmatpush.msra.mxu0 %v539
        %v541 = vand.u32 %v412, 4294901760
        %v542 = vsub.f32 %v412, %v541
        %v543 = vand.u32 %v542, 4294901760
        %v544 = vsub.f32 %v542, %v543
        %v545 = vand.u32 %v544, 4294901760
        %546 = vmatpush.msra.mxu0 %v545
        %v547 = vand.u32 %v411, 4294901760
        %v548 = vsub.f32 %v411, %v547
        %v549 = vand.u32 %v548, 4294901760
        %v550 = vsub.f32 %v548, %v549
        %v551 = vand.u32 %v550, 4294901760
        %552 = vmatpush.msra.mxu0 %v551
        %v553 = vand.u32 %v410, 4294901760
        %v554 = vsub.f32 %v410, %v553
        %v555 = vand.u32 %v554, 4294901760
        %v556 = vsub.f32 %v554, %v555
        %v557 = vand.u32 %v556, 4294901760
        %558 = vmatpush.msra.mxu0 %v557
        %v559 = vand.u32 %v409, 4294901760
        %v560 = vsub.f32 %v409, %v559
        %v561 = vand.u32 %v560, 4294901760
        %v562 = vsub.f32 %v560, %v561
        %v563 = vand.u32 %v562, 4294901760
        %564 = vmatpush.msra.mxu0 %v563
        %v565 = vand.u32 %v408, 4294901760
        %v566 = vsub.f32 %v408, %v565
        %v567 = vand.u32 %v566, 4294901760
        %v568 = vsub.f32 %v566, %v567
        %v569 = vand.u32 %v568, 4294901760
        %570 = vmatpush.msra.mxu0 %v569
        %v571 = vand.u32 %v407, 4294901760
        %v572 = vsub.f32 %v407, %v571
        %v573 = vand.u32 %v572, 4294901760
        %v574 = vsub.f32 %v572, %v573
        %v575 = vand.u32 %v574, 4294901760
        %576 = vmatpush.msra.mxu0 %v575
        %v577 = vand.u32 %v406, 4294901760
        %v578 = vsub.f32 %v406, %v577
        %v579 = vand.u32 %v578, 4294901760
        %v580 = vsub.f32 %v578, %v579
        %v581 = vand.u32 %v580, 4294901760
        %582 = vmatpush.msra.mxu0 %v581
        %v583 = vand.u32 %v402, 4294901760
        %584 = vmatmul.f32.gmra.mxu0 %v583
        %v585 = vpop.f32.mrf.mxu0
        %v586 = vadd.f32 %v477, %v585
        %v587 = vand.u32 %v404, 4294901760
        %588 = vmatmul.f32.gmra.mxu0 %v587
        %v589 = vpop.f32.mrf.mxu0
        %v590 = vadd.f32 %v485, %v589
        %591 = vdwg.mxu0
        %v592 = vand.u32 %v421, 4294901760
        %v593 = vsub.f32 %v421, %v592
        %594 = vmatpush.msra.mxu0 %v593
        %v595 = vand.u32 %v420, 4294901760
        %v596 = vsub.f32 %v420, %v595
        %597 = vmatpush.msra.mxu0 %v596
        %v598 = vand.u32 %v419, 4294901760
        %v599 = vsub.f32 %v419, %v598
        %600 = vmatpush.msra.mxu0 %v599
        %v601 = vand.u32 %v418, 4294901760
        %v602 = vsub.f32 %v418, %v601
        %603 = vmatpush.msra.mxu0 %v602
        %v604 = vand.u32 %v417, 4294901760
        %v605 = vsub.f32 %v417, %v604
        %606 = vmatpush.msra.mxu0 %v605
        %v607 = vand.u32 %v416, 4294901760
        %v608 = vsub.f32 %v416, %v607
        %609 = vmatpush.msra.mxu0 %v608
        %v610 = vand.u32 %v415, 4294901760
        %v611 = vsub.f32 %v415, %v610
        %612 = vmatpush.msra.mxu0 %v611
        %v613 = vand.u32 %v414, 4294901760
        %v614 = vsub.f32 %v414, %v613
        %615 = vmatpush.msra.mxu0 %v614
        %v616 = vand.u32 %v413, 4294901760
        %v617 = vsub.f32 %v413, %v616
        %618 = vmatpush.msra.mxu0 %v617
        %v619 = vand.u32 %v412, 4294901760
        %v620 = vsub.f32 %v412, %v619
        %621 = vmatpush.msra.mxu0 %v620
        %v622 = vand.u32 %v411, 4294901760
        %v623 = vsub.f32 %v411, %v622
        %624 = vmatpush.msra.mxu0 %v623
        %v625 = vand.u32 %v410, 4294901760
        %v626 = vsub.f32 %v410, %v625
        %627 = vmatpush.msra.mxu0 %v626
        %v628 = vand.u32 %v409, 4294901760
        %v629 = vsub.f32 %v409, %v628
        %630 = vmatpush.msra.mxu0 %v629
        %v631 = vand.u32 %v408, 4294901760
        %v632 = vsub.f32 %v408, %v631
        %633 = vmatpush.msra.mxu0 %v632
        %v634 = vand.u32 %v407, 4294901760
        %v635 = vsub.f32 %v407, %v634
        %636 = vmatpush.msra.mxu0 %v635
        %v637 = vand.u32 %v406, 4294901760
        %v638 = vsub.f32 %v406, %v637
        %639 = vmatpush.msra.mxu0 %v638
        %v640 = vand.u32 %v402, 4294901760
        %v641 = vsub.f32 %v402, %v640
        %642 = vmatmul.f32.gmra.mxu0 %v641
        %v643 = vpop.f32.mrf.mxu0
        %v644 = vadd.f32 %v586, %v643
        %v645 = vand.u32 %v404, 4294901760
        %v646 = vsub.f32 %v404, %v645
        %647 = vmatmul.f32.gmra.mxu0 %v646
        %v648 = vpop.f32.mrf.mxu0
        %v649 = vadd.f32 %v590, %v648
        %650 = vdwg.mxu0
        %v651 = vand.u32 %v421, 4294901760
        %652 = vmatpush.msra.mxu0 %v651
        %v653 = vand.u32 %v420, 4294901760
        %654 = vmatpush.msra.mxu0 %v653
        %v655 = vand.u32 %v419, 4294901760
        %656 = vmatpush.msra.mxu0 %v655
        %v657 = vand.u32 %v418, 4294901760
        %658 = vmatpush.msra.mxu0 %v657
        %v659 = vand.u32 %v417, 4294901760
        %660 = vmatpush.msra.mxu0 %v659
        %v661 = vand.u32 %v416, 4294901760
        %662 = vmatpush.msra.mxu0 %v661
        %v663 = vand.u32 %v415, 4294901760
        %664 = vmatpush.msra.mxu0 %v663
        %v665 = vand.u32 %v414, 4294901760
        %666 = vmatpush.msra.mxu0 %v665
        %v667 = vand.u32 %v413, 4294901760
        %668 = vmatpush.msra.mxu0 %v667
        %v669 = vand.u32 %v412, 4294901760
        %670 = vmatpush.msra.mxu0 %v669
        %v671 = vand.u32 %v411, 4294901760
        %672 = vmatpush.msra.mxu0 %v671
        %v673 = vand.u32 %v410, 4294901760
        %674 = vmatpush.msra.mxu0 %v673
        %v675 = vand.u32 %v409, 4294901760
        %676 = vmatpush.msra.mxu0 %v675
        %v677 = vand.u32 %v408, 4294901760
        %678 = vmatpush.msra.mxu0 %v677
        %v679 = vand.u32 %v407, 4294901760
        %680 = vmatpush.msra.mxu0 %v679
        %v681 = vand.u32 %v406, 4294901760
        %682 = vmatpush.msra.mxu0 %v681
        %v683 = vand.u32 %v402, 4294901760
        %v684 = vsub.f32 %v402, %v683
        %v685 = vand.u32 %v684, 4294901760
        %686 = vmatmul.f32.gmra.mxu0 %v685
        %v687 = vpop.f32.mrf.mxu0
        %v688 = vadd.f32 %v644, %v687
        %v689 = vand.u32 %v404, 4294901760
        %v690 = vsub.f32 %v404, %v689
        %v691 = vand.u32 %v690, 4294901760
        %692 = vmatmul.f32.gmra.mxu0 %v691
        %v693 = vpop.f32.mrf.mxu0
        %v694 = vadd.f32 %v649, %v693
        %695 = vdwg.mxu0
        %v696 = vand.u32 %v421, 4294901760
        %v697 = vsub.f32 %v421, %v696
        %v698 = vand.u32 %v697, 4294901760
        %699 = vmatpush.msra.mxu0 %v698
        %v700 = vand.u32 %v420, 4294901760
        %v701 = vsub.f32 %v420, %v700
        %v702 = vand.u32 %v701, 4294901760
        %703 = vmatpush.msra.mxu0 %v702
        %v704 = vand.u32 %v419, 4294901760
        %v705 = vsub.f32 %v419, %v704
        %v706 = vand.u32 %v705, 4294901760
        %707 = vmatpush.msra.mxu0 %v706
        %v708 = vand.u32 %v418, 4294901760
        %v709 = vsub.f32 %v418, %v708
        %v710 = vand.u32 %v709, 4294901760
        %711 = vmatpush.msra.mxu0 %v710
        %v712 = vand.u32 %v417, 4294901760
        %v713 = vsub.f32 %v417, %v712
        %v714 = vand.u32 %v713, 4294901760
        %715 = vmatpush.msra.mxu0 %v714
        %v716 = vand.u32 %v416, 4294901760
        %v717 = vsub.f32 %v416, %v716
        %v718 = vand.u32 %v717, 4294901760
        %719 = vmatpush.msra.mxu0 %v718
        %v720 = vand.u32 %v415, 4294901760
        %v721 = vsub.f32 %v415, %v720
        %v722 = vand.u32 %v721, 4294901760
        %723 = vmatpush.msra.mxu0 %v722
        %v724 = vand.u32 %v414, 4294901760
        %v725 = vsub.f32 %v414, %v724
        %v726 = vand.u32 %v725, 4294901760
        %727 = vmatpush.msra.mxu0 %v726
        %v728 = vand.u32 %v413, 4294901760
        %v729 = vsub.f32 %v413, %v728
        %v730 = vand.u32 %v729, 4294901760
        %731 = vmatpush.msra.mxu0 %v730
        %v732 = vand.u32 %v412, 4294901760
        %v733 = vsub.f32 %v412, %v732
        %v734 = vand.u32 %v733, 4294901760
        %735 = vmatpush.msra.mxu0 %v734
        %v736 = vand.u32 %v411, 4294901760
        %v737 = vsub.f32 %v411, %v736
        %v738 = vand.u32 %v737, 4294901760
        %739 = vmatpush.msra.mxu0 %v738
        %v740 = vand.u32 %v410, 4294901760
        %v741 = vsub.f32 %v410, %v740
        %v742 = vand.u32 %v741, 4294901760
        %743 = vmatpush.msra.mxu0 %v742
        %v744 = vand.u32 %v409, 4294901760
        %v745 = vsub.f32 %v409, %v744
        %v746 = vand.u32 %v745, 4294901760
        %747 = vmatpush.msra.mxu0 %v746
        %v748 = vand.u32 %v408, 4294901760
        %v749 = vsub.f32 %v408, %v748
        %v750 = vand.u32 %v749, 4294901760
        %751 = vmatpush.msra.mxu0 %v750
        %v752 = vand.u32 %v407, 4294901760
        %v753 = vsub.f32 %v407, %v752
        %v754 = vand.u32 %v753, 4294901760
        %755 = vmatpush.msra.mxu0 %v754
        %v756 = vand.u32 %v406, 4294901760
        %v757 = vsub.f32 %v406, %v756
        %v758 = vand.u32 %v757, 4294901760
        %759 = vmatpush.msra.mxu0 %v758
        %v760 = vand.u32 %v402, 4294901760
        %761 = vmatmul.f32.gmra.mxu0 %v760
        %v762 = vpop.f32.mrf.mxu0
        %v763 = vadd.f32 %v688, %v762
        %v764 = vand.u32 %v404, 4294901760
        %765 = vmatmul.f32.gmra.mxu0 %v764
        %v766 = vpop.f32.mrf.mxu0
        %v767 = vadd.f32 %v694, %v766
        %768 = vdwg.mxu0
        %v769 = vand.u32 %v421, 4294901760
        %770 = vmatpush.msra.mxu0 %v769
        %v771 = vand.u32 %v420, 4294901760
        %772 = vmatpush.msra.mxu0 %v771
        %v773 = vand.u32 %v419, 4294901760
        %774 = vmatpush.msra.mxu0 %v773
        %v775 = vand.u32 %v418, 4294901760
        %776 = vmatpush.msra.mxu0 %v775
        %v777 = vand.u32 %v417, 4294901760
        %778 = vmatpush.msra.mxu0 %v777
        %v779 = vand.u32 %v416, 4294901760
        %780 = vmatpush.msra.mxu0 %v779
        %v781 = vand.u32 %v415, 4294901760
        %782 = vmatpush.msra.mxu0 %v781
        %v783 = vand.u32 %v414, 4294901760
        %784 = vmatpush.msra.mxu0 %v783
        %v785 = vand.u32 %v413, 4294901760
        %786 = vmatpush.msra.mxu0 %v785
        %v787 = vand.u32 %v412, 4294901760
        %788 = vmatpush.msra.mxu0 %v787
        %v789 = vand.u32 %v411, 4294901760
        %790 = vmatpush.msra.mxu0 %v789
        %v791 = vand.u32 %v410, 4294901760
        %792 = vmatpush.msra.mxu0 %v791
        %v793 = vand.u32 %v409, 4294901760
        %794 = vmatpush.msra.mxu0 %v793
        %v795 = vand.u32 %v408, 4294901760
        %796 = vmatpush.msra.mxu0 %v795
        %v797 = vand.u32 %v407, 4294901760
        %798 = vmatpush.msra.mxu0 %v797
        %v799 = vand.u32 %v406, 4294901760
        %800 = vmatpush.msra.mxu0 %v799
        %v801 = vand.u32 %v402, 4294901760
        %802 = vmatmul.f32.gmra.mxu0 %v801
        %v803 = vpop.f32.mrf.mxu0
        %v804 = vadd.f32 %v763, %v803
        %v805 = vand.u32 %v404, 4294901760
        %806 = vmatmul.f32.gmra.mxu0 %v805
        %v807 = vpop.f32.mrf.mxu0
        %v808 = vadd.f32 %v767, %v807
        %809 = vdwg.mxu0
        %v810 = vand.u32 %v437, 4294901760
        %811 = vmatpush.msra.mxu0 %v810
        %v812 = vand.u32 %v436, 4294901760
        %813 = vmatpush.msra.mxu0 %v812
        %v814 = vand.u32 %v435, 4294901760
        %815 = vmatpush.msra.mxu0 %v814
        %v816 = vand.u32 %v434, 4294901760
        %817 = vmatpush.msra.mxu0 %v816
        %v818 = vand.u32 %v433, 4294901760
        %819 = vmatpush.msra.mxu0 %v818
        %v820 = vand.u32 %v432, 4294901760
        %821 = vmatpush.msra.mxu0 %v820
        %v822 = vand.u32 %v431, 4294901760
        %823 = vmatpush.msra.mxu0 %v822
        %v824 = vand.u32 %v430, 4294901760
        %825 = vmatpush.msra.mxu0 %v824
        %v826 = vand.u32 %v429, 4294901760
        %827 = vmatpush.msra.mxu0 %v826
        %v828 = vand.u32 %v428, 4294901760
        %829 = vmatpush.msra.mxu0 %v828
        %v830 = vand.u32 %v427, 4294901760
        %831 = vmatpush.msra.mxu0 %v830
        %v832 = vand.u32 %v426, 4294901760
        %833 = vmatpush.msra.mxu0 %v832
        %v834 = vand.u32 %v425, 4294901760
        %835 = vmatpush.msra.mxu0 %v834
        %v836 = vand.u32 %v424, 4294901760
        %837 = vmatpush.msra.mxu0 %v836
        %v838 = vand.u32 %v423, 4294901760
        %839 = vmatpush.msra.mxu0 %v838
        %v840 = vand.u32 %v422, 4294901760
        %841 = vmatpush.msra.mxu0 %v840
        %v842 = vand.u32 %v403, 4294901760
        %v843 = vsub.f32 %v403, %v842
        %v844 = vand.u32 %v843, 4294901760
        %v845 = vsub.f32 %v843, %v844
        %v846 = vand.u32 %v845, 4294901760
        %847 = vmatmul.f32.gmra.mxu0 %v846
        %v848 = vpop.f32.mrf.mxu0
        %v849 = vadd.f32 %v804, %v848
        %v850 = vand.u32 %v405, 4294901760
        %v851 = vsub.f32 %v405, %v850
        %v852 = vand.u32 %v851, 4294901760
        %v853 = vsub.f32 %v851, %v852
        %v854 = vand.u32 %v853, 4294901760
        %855 = vmatmul.f32.gmra.mxu0 %v854
        %v856 = vpop.f32.mrf.mxu0
        %v857 = vadd.f32 %v808, %v856
        %858 = vdwg.mxu0
        %v859 = vand.u32 %v437, 4294901760
        %v860 = vsub.f32 %v437, %v859
        %v861 = vand.u32 %v860, 4294901760
        %v862 = vsub.f32 %v860, %v861
        %v863 = vand.u32 %v862, 4294901760
        %864 = vmatpush.msra.mxu0 %v863
        %v865 = vand.u32 %v436, 4294901760
        %v866 = vsub.f32 %v436, %v865
        %v867 = vand.u32 %v866, 4294901760
        %v868 = vsub.f32 %v866, %v867
        %v869 = vand.u32 %v868, 4294901760
        %870 = vmatpush.msra.mxu0 %v869
        %v871 = vand.u32 %v435, 4294901760
        %v872 = vsub.f32 %v435, %v871
        %v873 = vand.u32 %v872, 4294901760
        %v874 = vsub.f32 %v872, %v873
        %v875 = vand.u32 %v874, 4294901760
        %876 = vmatpush.msra.mxu0 %v875
        %v877 = vand.u32 %v434, 4294901760
        %v878 = vsub.f32 %v434, %v877
        %v879 = vand.u32 %v878, 4294901760
        %v880 = vsub.f32 %v878, %v879
        %v881 = vand.u32 %v880, 4294901760
        %882 = vmatpush.msra.mxu0 %v881
        %v883 = vand.u32 %v433, 4294901760
        %v884 = vsub.f32 %v433, %v883
        %v885 = vand.u32 %v884, 4294901760
        %v886 = vsub.f32 %v884, %v885
        %v887 = vand.u32 %v886, 4294901760
        %888 = vmatpush.msra.mxu0 %v887
        %v889 = vand.u32 %v432, 4294901760
        %v890 = vsub.f32 %v432, %v889
        %v891 = vand.u32 %v890, 4294901760
        %v892 = vsub.f32 %v890, %v891
        %v893 = vand.u32 %v892, 4294901760
        %894 = vmatpush.msra.mxu0 %v893
        %v895 = vand.u32 %v431, 4294901760
        %v896 = vsub.f32 %v431, %v895
        %v897 = vand.u32 %v896, 4294901760
        %v898 = vsub.f32 %v896, %v897
        %v899 = vand.u32 %v898, 4294901760
        %900 = vmatpush.msra.mxu0 %v899
        %v901 = vand.u32 %v430, 4294901760
        %v902 = vsub.f32 %v430, %v901
        %v903 = vand.u32 %v902, 4294901760
        %v904 = vsub.f32 %v902, %v903
        %v905 = vand.u32 %v904, 4294901760
        %906 = vmatpush.msra.mxu0 %v905
        %v907 = vand.u32 %v429, 4294901760
        %v908 = vsub.f32 %v429, %v907
        %v909 = vand.u32 %v908, 4294901760
        %v910 = vsub.f32 %v908, %v909
        %v911 = vand.u32 %v910, 4294901760
        %912 = vmatpush.msra.mxu0 %v911
        %v913 = vand.u32 %v428, 4294901760
        %v914 = vsub.f32 %v428, %v913
        %v915 = vand.u32 %v914, 4294901760
        %v916 = vsub.f32 %v914, %v915
        %v917 = vand.u32 %v916, 4294901760
        %918 = vmatpush.msra.mxu0 %v917
        %v919 = vand.u32 %v427, 4294901760
        %v920 = vsub.f32 %v427, %v919
        %v921 = vand.u32 %v920, 4294901760
        %v922 = vsub.f32 %v920, %v921
        %v923 = vand.u32 %v922, 4294901760
        %924 = vmatpush.msra.mxu0 %v923
        %v925 = vand.u32 %v426, 4294901760
        %v926 = vsub.f32 %v426, %v925
        %v927 = vand.u32 %v926, 4294901760
        %v928 = vsub.f32 %v926, %v927
        %v929 = vand.u32 %v928, 4294901760
        %930 = vmatpush.msra.mxu0 %v929
        %v931 = vand.u32 %v425, 4294901760
        %v932 = vsub.f32 %v425, %v931
        %v933 = vand.u32 %v932, 4294901760
        %v934 = vsub.f32 %v932, %v933
        %v935 = vand.u32 %v934, 4294901760
        %936 = vmatpush.msra.mxu0 %v935
        %v937 = vand.u32 %v424, 4294901760
        %v938 = vsub.f32 %v424, %v937
        %v939 = vand.u32 %v938, 4294901760
        %v940 = vsub.f32 %v938, %v939
        %v941 = vand.u32 %v940, 4294901760
        %942 = vmatpush.msra.mxu0 %v941
        %v943 = vand.u32 %v423, 4294901760
        %v944 = vsub.f32 %v423, %v943
        %v945 = vand.u32 %v944, 4294901760
        %v946 = vsub.f32 %v944, %v945
        %v947 = vand.u32 %v946, 4294901760
        %948 = vmatpush.msra.mxu0 %v947
        %v949 = vand.u32 %v422, 4294901760
        %v950 = vsub.f32 %v422, %v949
        %v951 = vand.u32 %v950, 4294901760
        %v952 = vsub.f32 %v950, %v951
        %v953 = vand.u32 %v952, 4294901760
        %954 = vmatpush.msra.mxu0 %v953
        %v955 = vand.u32 %v403, 4294901760
        %956 = vmatmul.f32.gmra.mxu0 %v955
        %v957 = vpop.f32.mrf.mxu0
        %v958 = vadd.f32 %v849, %v957
        %v959 = vand.u32 %v405, 4294901760
        %960 = vmatmul.f32.gmra.mxu0 %v959
        %v961 = vpop.f32.mrf.mxu0
        %v962 = vadd.f32 %v857, %v961
        %963 = vdwg.mxu0
        %v964 = vand.u32 %v437, 4294901760
        %v965 = vsub.f32 %v437, %v964
        %966 = vmatpush.msra.mxu0 %v965
        %v967 = vand.u32 %v436, 4294901760
        %v968 = vsub.f32 %v436, %v967
        %969 = vmatpush.msra.mxu0 %v968
        %v970 = vand.u32 %v435, 4294901760
        %v971 = vsub.f32 %v435, %v970
        %972 = vmatpush.msra.mxu0 %v971
        %v973 = vand.u32 %v434, 4294901760
        %v974 = vsub.f32 %v434, %v973
        %975 = vmatpush.msra.mxu0 %v974
        %v976 = vand.u32 %v433, 4294901760
        %v977 = vsub.f32 %v433, %v976
        %978 = vmatpush.msra.mxu0 %v977
        %v979 = vand.u32 %v432, 4294901760
        %v980 = vsub.f32 %v432, %v979
        %981 = vmatpush.msra.mxu0 %v980
        %v982 = vand.u32 %v431, 4294901760
        %v983 = vsub.f32 %v431, %v982
        %984 = vmatpush.msra.mxu0 %v983
        %v985 = vand.u32 %v430, 4294901760
        %v986 = vsub.f32 %v430, %v985
        %987 = vmatpush.msra.mxu0 %v986
        %v988 = vand.u32 %v429, 4294901760
        %v989 = vsub.f32 %v429, %v988
        %990 = vmatpush.msra.mxu0 %v989
        %v991 = vand.u32 %v428, 4294901760
        %v992 = vsub.f32 %v428, %v991
        %993 = vmatpush.msra.mxu0 %v992
        %v994 = vand.u32 %v427, 4294901760
        %v995 = vsub.f32 %v427, %v994
        %996 = vmatpush.msra.mxu0 %v995
        %v997 = vand.u32 %v426, 4294901760
        %v998 = vsub.f32 %v426, %v997
        %999 = vmatpush.msra.mxu0 %v998
        %v1000 = vand.u32 %v425, 4294901760
        %v1001 = vsub.f32 %v425, %v1000
        %1002 = vmatpush.msra.mxu0 %v1001
        %v1003 = vand.u32 %v424, 4294901760
        %v1004 = vsub.f32 %v424, %v1003
        %1005 = vmatpush.msra.mxu0 %v1004
        %v1006 = vand.u32 %v423, 4294901760
        %v1007 = vsub.f32 %v423, %v1006
        %1008 = vmatpush.msra.mxu0 %v1007
        %v1009 = vand.u32 %v422, 4294901760
        %v1010 = vsub.f32 %v422, %v1009
        %1011 = vmatpush.msra.mxu0 %v1010
        %v1012 = vand.u32 %v403, 4294901760
        %v1013 = vsub.f32 %v403, %v1012
        %1014 = vmatmul.f32.gmra.mxu0 %v1013
        %v1015 = vpop.f32.mrf.mxu0
        %v1016 = vadd.f32 %v958, %v1015
        %v1017 = vand.u32 %v405, 4294901760
        %v1018 = vsub.f32 %v405, %v1017
        %1019 = vmatmul.f32.gmra.mxu0 %v1018
        %v1020 = vpop.f32.mrf.mxu0
        %v1021 = vadd.f32 %v962, %v1020
        %1022 = vdwg.mxu0
        %v1023 = vand.u32 %v437, 4294901760
        %1024 = vmatpush.msra.mxu0 %v1023
        %v1025 = vand.u32 %v436, 4294901760
        %1026 = vmatpush.msra.mxu0 %v1025
        %v1027 = vand.u32 %v435, 4294901760
        %1028 = vmatpush.msra.mxu0 %v1027
        %v1029 = vand.u32 %v434, 4294901760
        %1030 = vmatpush.msra.mxu0 %v1029
        %v1031 = vand.u32 %v433, 4294901760
        %1032 = vmatpush.msra.mxu0 %v1031
        %v1033 = vand.u32 %v432, 4294901760
        %1034 = vmatpush.msra.mxu0 %v1033
        %v1035 = vand.u32 %v431, 4294901760
        %1036 = vmatpush.msra.mxu0 %v1035
        %v1037 = vand.u32 %v430, 4294901760
        %1038 = vmatpush.msra.mxu0 %v1037
        %v1039 = vand.u32 %v429, 4294901760
        %1040 = vmatpush.msra.mxu0 %v1039
        %v1041 = vand.u32 %v428, 4294901760
        %1042 = vmatpush.msra.mxu0 %v1041
        %v1043 = vand.u32 %v427, 4294901760
        %1044 = vmatpush.msra.mxu0 %v1043
        %v1045 = vand.u32 %v426, 4294901760
        %1046 = vmatpush.msra.mxu0 %v1045
        %v1047 = vand.u32 %v425, 4294901760
        %1048 = vmatpush.msra.mxu0 %v1047
        %v1049 = vand.u32 %v424, 4294901760
        %1050 = vmatpush.msra.mxu0 %v1049
        %v1051 = vand.u32 %v423, 4294901760
        %1052 = vmatpush.msra.mxu0 %v1051
        %v1053 = vand.u32 %v422, 4294901760
        %1054 = vmatpush.msra.mxu0 %v1053
        %v1055 = vand.u32 %v403, 4294901760
        %v1056 = vsub.f32 %v403, %v1055
        %v1057 = vand.u32 %v1056, 4294901760
        %1058 = vmatmul.f32.gmra.mxu0 %v1057
        %v1059 = vpop.f32.mrf.mxu0
        %v1060 = vadd.f32 %v1016, %v1059
        %v1061 = vand.u32 %v405, 4294901760
        %v1062 = vsub.f32 %v405, %v1061
        %v1063 = vand.u32 %v1062, 4294901760
        %1064 = vmatmul.f32.gmra.mxu0 %v1063
        %v1065 = vpop.f32.mrf.mxu0
        %v1066 = vadd.f32 %v1021, %v1065
        %1067 = vdwg.mxu0
        %v1068 = vand.u32 %v437, 4294901760
        %v1069 = vsub.f32 %v437, %v1068
        %v1070 = vand.u32 %v1069, 4294901760
        %1071 = vmatpush.msra.mxu0 %v1070
        %v1072 = vand.u32 %v436, 4294901760
        %v1073 = vsub.f32 %v436, %v1072
        %v1074 = vand.u32 %v1073, 4294901760
        %1075 = vmatpush.msra.mxu0 %v1074
        %v1076 = vand.u32 %v435, 4294901760
        %v1077 = vsub.f32 %v435, %v1076
        %v1078 = vand.u32 %v1077, 4294901760
        %1079 = vmatpush.msra.mxu0 %v1078
        %v1080 = vand.u32 %v434, 4294901760
        %v1081 = vsub.f32 %v434, %v1080
        %v1082 = vand.u32 %v1081, 4294901760
        %1083 = vmatpush.msra.mxu0 %v1082
        %v1084 = vand.u32 %v433, 4294901760
        %v1085 = vsub.f32 %v433, %v1084
        %v1086 = vand.u32 %v1085, 4294901760
        %1087 = vmatpush.msra.mxu0 %v1086
        %v1088 = vand.u32 %v432, 4294901760
        %v1089 = vsub.f32 %v432, %v1088
        %v1090 = vand.u32 %v1089, 4294901760
        %1091 = vmatpush.msra.mxu0 %v1090
        %v1092 = vand.u32 %v431, 4294901760
        %v1093 = vsub.f32 %v431, %v1092
        %v1094 = vand.u32 %v1093, 4294901760
        %1095 = vmatpush.msra.mxu0 %v1094
        %v1096 = vand.u32 %v430, 4294901760
        %v1097 = vsub.f32 %v430, %v1096
        %v1098 = vand.u32 %v1097, 4294901760
        %1099 = vmatpush.msra.mxu0 %v1098
        %v1100 = vand.u32 %v429, 4294901760
        %v1101 = vsub.f32 %v429, %v1100
        %v1102 = vand.u32 %v1101, 4294901760
        %1103 = vmatpush.msra.mxu0 %v1102
        %v1104 = vand.u32 %v428, 4294901760
        %v1105 = vsub.f32 %v428, %v1104
        %v1106 = vand.u32 %v1105, 4294901760
        %1107 = vmatpush.msra.mxu0 %v1106
        %v1108 = vand.u32 %v427, 4294901760
        %v1109 = vsub.f32 %v427, %v1108
        %v1110 = vand.u32 %v1109, 4294901760
        %1111 = vmatpush.msra.mxu0 %v1110
        %v1112 = vand.u32 %v426, 4294901760
        %v1113 = vsub.f32 %v426, %v1112
        %v1114 = vand.u32 %v1113, 4294901760
        %1115 = vmatpush.msra.mxu0 %v1114
        %v1116 = vand.u32 %v425, 4294901760
        %v1117 = vsub.f32 %v425, %v1116
        %v1118 = vand.u32 %v1117, 4294901760
        %1119 = vmatpush.msra.mxu0 %v1118
        %v1120 = vand.u32 %v424, 4294901760
        %v1121 = vsub.f32 %v424, %v1120
        %v1122 = vand.u32 %v1121, 4294901760
        %1123 = vmatpush.msra.mxu0 %v1122
        %v1124 = vand.u32 %v423, 4294901760
        %v1125 = vsub.f32 %v423, %v1124
        %v1126 = vand.u32 %v1125, 4294901760
        %1127 = vmatpush.msra.mxu0 %v1126
        %v1128 = vand.u32 %v422, 4294901760
        %v1129 = vsub.f32 %v422, %v1128
        %v1130 = vand.u32 %v1129, 4294901760
        %1131 = vmatpush.msra.mxu0 %v1130
        %v1132 = vand.u32 %v403, 4294901760
        %1133 = vmatmul.f32.gmra.mxu0 %v1132
        %v1134 = vpop.f32.mrf.mxu0
        %v1135 = vadd.f32 %v1060, %v1134
        %v1136 = vand.u32 %v405, 4294901760
        %1137 = vmatmul.f32.gmra.mxu0 %v1136
        %v1138 = vpop.f32.mrf.mxu0
        %v1139 = vadd.f32 %v1066, %v1138
        %1140 = vdwg.mxu0
        %v1141 = vand.u32 %v437, 4294901760
        %1142 = vmatpush.msra.mxu0 %v1141
        %v1143 = vand.u32 %v436, 4294901760
        %1144 = vmatpush.msra.mxu0 %v1143
        %v1145 = vand.u32 %v435, 4294901760
        %1146 = vmatpush.msra.mxu0 %v1145
        %v1147 = vand.u32 %v434, 4294901760
        %1148 = vmatpush.msra.mxu0 %v1147
        %v1149 = vand.u32 %v433, 4294901760
        %1150 = vmatpush.msra.mxu0 %v1149
        %v1151 = vand.u32 %v432, 4294901760
        %1152 = vmatpush.msra.mxu0 %v1151
        %v1153 = vand.u32 %v431, 4294901760
        %1154 = vmatpush.msra.mxu0 %v1153
        %v1155 = vand.u32 %v430, 4294901760
        %1156 = vmatpush.msra.mxu0 %v1155
        %v1157 = vand.u32 %v429, 4294901760
        %1158 = vmatpush.msra.mxu0 %v1157
        %v1159 = vand.u32 %v428, 4294901760
        %1160 = vmatpush.msra.mxu0 %v1159
        %v1161 = vand.u32 %v427, 4294901760
        %1162 = vmatpush.msra.mxu0 %v1161
        %v1163 = vand.u32 %v426, 4294901760
        %1164 = vmatpush.msra.mxu0 %v1163
        %v1165 = vand.u32 %v425, 4294901760
        %1166 = vmatpush.msra.mxu0 %v1165
        %v1167 = vand.u32 %v424, 4294901760
        %1168 = vmatpush.msra.mxu0 %v1167
        %v1169 = vand.u32 %v423, 4294901760
        %1170 = vmatpush.msra.mxu0 %v1169
        %v1171 = vand.u32 %v422, 4294901760
        %1172 = vmatpush.msra.mxu0 %v1171
        %v1173 = vand.u32 %v403, 4294901760
        %1174 = vmatmul.f32.gmra.mxu0 %v1173
        %v1175 = vpop.f32.mrf.mxu0
        %v1176 = vadd.f32 %v1135, %v1175
        %v1177 = vand.u32 %v405, 4294901760
        %1178 = vmatmul.f32.gmra.mxu0 %v1177
        %v1179 = vpop.f32.mrf.mxu0
        %v1180 = vadd.f32 %v1139, %v1179
        %1181 = vdwg.mxu0
        %v1182 = vadd.f32 %v400, %v1176
        %v1183 = vadd.f32 %v401, %v1180
        %vm1184 = vcmask 523264
        %1185 = vst.msk [vmem:[#allocation2] sm:$0xff] %vm1184, %v1182
        %1186 = vst.msk [vmem:[#allocation2 + $0x8] sm:$0xff] %vm1184, %v1183
        %p1187 = scmp.eq.s32.totalorder %s23, 2
        // Predicated region
        $region84: #{tpu_custom_call.1} parent=74 // pred_check
          %p1188 = pneg %p1187
        $region85: #{tpu_custom_call.1} parent=74 // pred_check_branch
          %1190 = sbr.rel (%p1188) target = $region87
        $region86: #{tpu_custom_call.1} parent=74 // pred_region
          %v1191 = vld [vmem:[#allocation2] sm:$0xff]
          %v1192 = vld [vmem:[#allocation2 + $0x8] sm:$0xff]
          %v1193 = vld [vmem:[%s2] sm:$0x1]
          %v1195 = vperm.slane %v1193, 0
          %v1197 = vadd.f32 %v1191, %v1195
          %v1198 = vadd.f32 %v1192, %v1195
          %v1199 = vtanh.pop %v1197
          %v1200 = vtanh.pop %v1198
          %v1201 = vld [vmem:[%s3] sm:$0xff]
          %v1202 = vld [vmem:[%s3 + $0x8] sm:$0xff]
          %v1203 = vld [vmem:[%s3 + $0x10] sm:$0xff]
          %v1204 = vld [vmem:[%s3 + $0x18] sm:$0xff]
          %v1205 = vld [vmem:[%s3 + $0x20] sm:$0xff]
          %v1206 = vld [vmem:[%s3 + $0x28] sm:$0xff]
          %v1207 = vld [vmem:[%s3 + $0x30] sm:$0xff]
          %v1208 = vld [vmem:[%s3 + $0x38] sm:$0xff]
          %v1209 = vld [vmem:[%s4] sm:$0x1]
          %v1211 = vperm.slane %v1209, 0
          %v1214 = vsel %vm1184, %v1199, 0
          %v1217 = vsel %vm1184, %v1200, 0
          %1219 = vmatpush.msra.mxu0 0.0
          %1220 = vmatpush.msra.mxu0 0.0
          %1221 = vmatpush.msra.mxu0 0.0
          %1222 = vmatpush.msra.mxu0 0.0
          %1223 = vmatpush.msra.mxu0 0.0
          %1224 = vmatpush.msra.mxu0 0.0
          %1225 = vmatpush.msra.mxu0 0.0
          %1226 = vmatpush.msra.mxu0 0.0
          %v1227 = vand.u32 %v1208, 4294901760
          %1228 = vmatpush.msra.mxu0 %v1227
          %v1229 = vand.u32 %v1207, 4294901760
          %1230 = vmatpush.msra.mxu0 %v1229
          %v1231 = vand.u32 %v1206, 4294901760
          %1232 = vmatpush.msra.mxu0 %v1231
          %v1233 = vand.u32 %v1205, 4294901760
          %1234 = vmatpush.msra.mxu0 %v1233
          %v1235 = vand.u32 %v1204, 4294901760
          %1236 = vmatpush.msra.mxu0 %v1235
          %v1237 = vand.u32 %v1203, 4294901760
          %1238 = vmatpush.msra.mxu0 %v1237
          %v1239 = vand.u32 %v1202, 4294901760
          %1240 = vmatpush.msra.mxu0 %v1239
          %v1241 = vand.u32 %v1201, 4294901760
          %1242 = vmatpush.msra.mxu0 %v1241
          %v1243 = vand.u32 %v1214, 4294901760
          %v1244 = vsub.f32 %v1214, %v1243
          %v1245 = vand.u32 %v1244, 4294901760
          %v1246 = vsub.f32 %v1244, %v1245
          %v1247 = vand.u32 %v1246, 4294901760
          %1248 = vmatmul.f32.gmra.mxu0 %v1247
          %v1249 = vpop.f32.mrf.mxu0
          %v1250 = vadd.f32 %v1211, %v1249
          %v1251 = vand.u32 %v1217, 4294901760
          %v1252 = vsub.f32 %v1217, %v1251
          %v1253 = vand.u32 %v1252, 4294901760
          %v1254 = vsub.f32 %v1252, %v1253
          %v1255 = vand.u32 %v1254, 4294901760
          %1256 = vmatmul.f32.gmra.mxu0 %v1255
          %v1257 = vpop.f32.mrf.mxu0
          %v1258 = vadd.f32 %v1211, %v1257
          %1259 = vdwg.mxu0
          %1260 = vmatpush.msra.mxu0 0.0
          %1261 = vmatpush.msra.mxu0 0.0
          %1262 = vmatpush.msra.mxu0 0.0
          %1263 = vmatpush.msra.mxu0 0.0
          %1264 = vmatpush.msra.mxu0 0.0
          %1265 = vmatpush.msra.mxu0 0.0
          %1266 = vmatpush.msra.mxu0 0.0
          %1267 = vmatpush.msra.mxu0 0.0
          %v1268 = vand.u32 %v1208, 4294901760
          %v1269 = vsub.f32 %v1208, %v1268
          %v1270 = vand.u32 %v1269, 4294901760
          %v1271 = vsub.f32 %v1269, %v1270
          %v1272 = vand.u32 %v1271, 4294901760
          %1273 = vmatpush.msra.mxu0 %v1272
          %v1274 = vand.u32 %v1207, 4294901760
          %v1275 = vsub.f32 %v1207, %v1274
          %v1276 = vand.u32 %v1275, 4294901760
          %v1277 = vsub.f32 %v1275, %v1276
          %v1278 = vand.u32 %v1277, 4294901760
          %1279 = vmatpush.msra.mxu0 %v1278
          %v1280 = vand.u32 %v1206, 4294901760
          %v1281 = vsub.f32 %v1206, %v1280
          %v1282 = vand.u32 %v1281, 4294901760
          %v1283 = vsub.f32 %v1281, %v1282
          %v1284 = vand.u32 %v1283, 4294901760
          %1285 = vmatpush.msra.mxu0 %v1284
          %v1286 = vand.u32 %v1205, 4294901760
          %v1287 = vsub.f32 %v1205, %v1286
          %v1288 = vand.u32 %v1287, 4294901760
          %v1289 = vsub.f32 %v1287, %v1288
          %v1290 = vand.u32 %v1289, 4294901760
          %1291 = vmatpush.msra.mxu0 %v1290
          %v1292 = vand.u32 %v1204, 4294901760
          %v1293 = vsub.f32 %v1204, %v1292
          %v1294 = vand.u32 %v1293, 4294901760
          %v1295 = vsub.f32 %v1293, %v1294
          %v1296 = vand.u32 %v1295, 4294901760
          %1297 = vmatpush.msra.mxu0 %v1296
          %v1298 = vand.u32 %v1203, 4294901760
          %v1299 = vsub.f32 %v1203, %v1298
          %v1300 = vand.u32 %v1299, 4294901760
          %v1301 = vsub.f32 %v1299, %v1300
          %v1302 = vand.u32 %v1301, 4294901760
          %1303 = vmatpush.msra.mxu0 %v1302
          %v1304 = vand.u32 %v1202, 4294901760
          %v1305 = vsub.f32 %v1202, %v1304
          %v1306 = vand.u32 %v1305, 4294901760
          %v1307 = vsub.f32 %v1305, %v1306
          %v1308 = vand.u32 %v1307, 4294901760
          %1309 = vmatpush.msra.mxu0 %v1308
          %v1310 = vand.u32 %v1201, 4294901760
          %v1311 = vsub.f32 %v1201, %v1310
          %v1312 = vand.u32 %v1311, 4294901760
          %v1313 = vsub.f32 %v1311, %v1312
          %v1314 = vand.u32 %v1313, 4294901760
          %1315 = vmatpush.msra.mxu0 %v1314
          %v1316 = vand.u32 %v1214, 4294901760
          %1317 = vmatmul.f32.gmra.mxu0 %v1316
          %v1318 = vpop.f32.mrf.mxu0
          %v1319 = vadd.f32 %v1250, %v1318
          %v1320 = vand.u32 %v1217, 4294901760
          %1321 = vmatmul.f32.gmra.mxu0 %v1320
          %v1322 = vpop.f32.mrf.mxu0
          %v1323 = vadd.f32 %v1258, %v1322
          %1324 = vdwg.mxu0
          %1325 = vmatpush.msra.mxu0 0.0
          %1326 = vmatpush.msra.mxu0 0.0
          %1327 = vmatpush.msra.mxu0 0.0
          %1328 = vmatpush.msra.mxu0 0.0
          %1329 = vmatpush.msra.mxu0 0.0
          %1330 = vmatpush.msra.mxu0 0.0
          %1331 = vmatpush.msra.mxu0 0.0
          %1332 = vmatpush.msra.mxu0 0.0
          %v1333 = vand.u32 %v1208, 4294901760
          %v1334 = vsub.f32 %v1208, %v1333
          %1335 = vmatpush.msra.mxu0 %v1334
          %v1336 = vand.u32 %v1207, 4294901760
          %v1337 = vsub.f32 %v1207, %v1336
          %1338 = vmatpush.msra.mxu0 %v1337
          %v1339 = vand.u32 %v1206, 4294901760
          %v1340 = vsub.f32 %v1206, %v1339
          %1341 = vmatpush.msra.mxu0 %v1340
          %v1342 = vand.u32 %v1205, 4294901760
          %v1343 = vsub.f32 %v1205, %v1342
          %1344 = vmatpush.msra.mxu0 %v1343
          %v1345 = vand.u32 %v1204, 4294901760
          %v1346 = vsub.f32 %v1204, %v1345
          %1347 = vmatpush.msra.mxu0 %v1346
          %v1348 = vand.u32 %v1203, 4294901760
          %v1349 = vsub.f32 %v1203, %v1348
          %1350 = vmatpush.msra.mxu0 %v1349
          %v1351 = vand.u32 %v1202, 4294901760
          %v1352 = vsub.f32 %v1202, %v1351
          %1353 = vmatpush.msra.mxu0 %v1352
          %v1354 = vand.u32 %v1201, 4294901760
          %v1355 = vsub.f32 %v1201, %v1354
          %1356 = vmatpush.msra.mxu0 %v1355
          %v1357 = vand.u32 %v1214, 4294901760
          %v1358 = vsub.f32 %v1214, %v1357
          %1359 = vmatmul.f32.gmra.mxu0 %v1358
          %v1360 = vpop.f32.mrf.mxu0
          %v1361 = vadd.f32 %v1319, %v1360
          %v1362 = vand.u32 %v1217, 4294901760
          %v1363 = vsub.f32 %v1217, %v1362
          %1364 = vmatmul.f32.gmra.mxu0 %v1363
          %v1365 = vpop.f32.mrf.mxu0
          %v1366 = vadd.f32 %v1323, %v1365
          %1367 = vdwg.mxu0
          %1368 = vmatpush.msra.mxu0 0.0
          %1369 = vmatpush.msra.mxu0 0.0
          %1370 = vmatpush.msra.mxu0 0.0
          %1371 = vmatpush.msra.mxu0 0.0
          %1372 = vmatpush.msra.mxu0 0.0
          %1373 = vmatpush.msra.mxu0 0.0
          %1374 = vmatpush.msra.mxu0 0.0
          %1375 = vmatpush.msra.mxu0 0.0
          %v1376 = vand.u32 %v1208, 4294901760
          %1377 = vmatpush.msra.mxu0 %v1376
          %v1378 = vand.u32 %v1207, 4294901760
          %1379 = vmatpush.msra.mxu0 %v1378
          %v1380 = vand.u32 %v1206, 4294901760
          %1381 = vmatpush.msra.mxu0 %v1380
          %v1382 = vand.u32 %v1205, 4294901760
          %1383 = vmatpush.msra.mxu0 %v1382
          %v1384 = vand.u32 %v1204, 4294901760
          %1385 = vmatpush.msra.mxu0 %v1384
          %v1386 = vand.u32 %v1203, 4294901760
          %1387 = vmatpush.msra.mxu0 %v1386
          %v1388 = vand.u32 %v1202, 4294901760
          %1389 = vmatpush.msra.mxu0 %v1388
          %v1390 = vand.u32 %v1201, 4294901760
          %1391 = vmatpush.msra.mxu0 %v1390
          %v1392 = vand.u32 %v1214, 4294901760
          %v1393 = vsub.f32 %v1214, %v1392
          %v1394 = vand.u32 %v1393, 4294901760
          %1395 = vmatmul.f32.gmra.mxu0 %v1394
          %v1396 = vpop.f32.mrf.mxu0
          %v1397 = vadd.f32 %v1361, %v1396
          %v1398 = vand.u32 %v1217, 4294901760
          %v1399 = vsub.f32 %v1217, %v1398
          %v1400 = vand.u32 %v1399, 4294901760
          %1401 = vmatmul.f32.gmra.mxu0 %v1400
          %v1402 = vpop.f32.mrf.mxu0
          %v1403 = vadd.f32 %v1366, %v1402
          %1404 = vdwg.mxu0
          %1405 = vmatpush.msra.mxu0 0.0
          %1406 = vmatpush.msra.mxu0 0.0
          %1407 = vmatpush.msra.mxu0 0.0
          %1408 = vmatpush.msra.mxu0 0.0
          %1409 = vmatpush.msra.mxu0 0.0
          %1410 = vmatpush.msra.mxu0 0.0
          %1411 = vmatpush.msra.mxu0 0.0
          %1412 = vmatpush.msra.mxu0 0.0
          %v1413 = vand.u32 %v1208, 4294901760
          %v1414 = vsub.f32 %v1208, %v1413
          %v1415 = vand.u32 %v1414, 4294901760
          %1416 = vmatpush.msra.mxu0 %v1415
          %v1417 = vand.u32 %v1207, 4294901760
          %v1418 = vsub.f32 %v1207, %v1417
          %v1419 = vand.u32 %v1418, 4294901760
          %1420 = vmatpush.msra.mxu0 %v1419
          %v1421 = vand.u32 %v1206, 4294901760
          %v1422 = vsub.f32 %v1206, %v1421
          %v1423 = vand.u32 %v1422, 4294901760
          %1424 = vmatpush.msra.mxu0 %v1423
          %v1425 = vand.u32 %v1205, 4294901760
          %v1426 = vsub.f32 %v1205, %v1425
          %v1427 = vand.u32 %v1426, 4294901760
          %1428 = vmatpush.msra.mxu0 %v1427
          %v1429 = vand.u32 %v1204, 4294901760
          %v1430 = vsub.f32 %v1204, %v1429
          %v1431 = vand.u32 %v1430, 4294901760
          %1432 = vmatpush.msra.mxu0 %v1431
          %v1433 = vand.u32 %v1203, 4294901760
          %v1434 = vsub.f32 %v1203, %v1433
          %v1435 = vand.u32 %v1434, 4294901760
          %1436 = vmatpush.msra.mxu0 %v1435
          %v1437 = vand.u32 %v1202, 4294901760
          %v1438 = vsub.f32 %v1202, %v1437
          %v1439 = vand.u32 %v1438, 4294901760
          %1440 = vmatpush.msra.mxu0 %v1439
          %v1441 = vand.u32 %v1201, 4294901760
          %v1442 = vsub.f32 %v1201, %v1441
          %v1443 = vand.u32 %v1442, 4294901760
          %1444 = vmatpush.msra.mxu0 %v1443
          %v1445 = vand.u32 %v1214, 4294901760
          %1446 = vmatmul.f32.gmra.mxu0 %v1445
          %v1447 = vpop.f32.mrf.mxu0
          %v1448 = vadd.f32 %v1397, %v1447
          %v1449 = vand.u32 %v1217, 4294901760
          %1450 = vmatmul.f32.gmra.mxu0 %v1449
          %v1451 = vpop.f32.mrf.mxu0
          %v1452 = vadd.f32 %v1403, %v1451
          %1453 = vdwg.mxu0
          %1454 = vmatpush.msra.mxu0 0.0
          %1455 = vmatpush.msra.mxu0 0.0
          %1456 = vmatpush.msra.mxu0 0.0
          %1457 = vmatpush.msra.mxu0 0.0
          %1458 = vmatpush.msra.mxu0 0.0
          %1459 = vmatpush.msra.mxu0 0.0
          %1460 = vmatpush.msra.mxu0 0.0
          %1461 = vmatpush.msra.mxu0 0.0
          %v1462 = vand.u32 %v1208, 4294901760
          %1463 = vmatpush.msra.mxu0 %v1462
          %v1464 = vand.u32 %v1207, 4294901760
          %1465 = vmatpush.msra.mxu0 %v1464
          %v1466 = vand.u32 %v1206, 4294901760
          %1467 = vmatpush.msra.mxu0 %v1466
          %v1468 = vand.u32 %v1205, 4294901760
          %1469 = vmatpush.msra.mxu0 %v1468
          %v1470 = vand.u32 %v1204, 4294901760
          %1471 = vmatpush.msra.mxu0 %v1470
          %v1472 = vand.u32 %v1203, 4294901760
          %1473 = vmatpush.msra.mxu0 %v1472
          %v1474 = vand.u32 %v1202, 4294901760
          %1475 = vmatpush.msra.mxu0 %v1474
          %v1476 = vand.u32 %v1201, 4294901760
          %1477 = vmatpush.msra.mxu0 %v1476
          %v1478 = vand.u32 %v1214, 4294901760
          %1479 = vmatmul.f32.gmra.mxu0 %v1478
          %v1480 = vpop.f32.mrf.mxu0
          %v1481 = vadd.f32 %v1448, %v1480
          %v1482 = vand.u32 %v1217, 4294901760
          %1483 = vmatmul.f32.gmra.mxu0 %v1482
          %v1484 = vpop.f32.mrf.mxu0
          %v1485 = vadd.f32 %v1452, %v1484
          %1486 = vdwg.mxu0
          %v1487 = vtanh.pop %v1481
          %v1488 = vtanh.pop %v1485
          %v1489 = vld [vmem:[%s5] sm:$0xff]
          %v1490 = vld [vmem:[%s5 + $0x8] sm:$0xff]
          %v1491 = vld [vmem:[%s5 + $0x10] sm:$0xff]
          %v1492 = vld [vmem:[%s5 + $0x18] sm:$0xff]
          %v1493 = vld [vmem:[%s5 + $0x20] sm:$0xff]
          %v1494 = vld [vmem:[%s5 + $0x28] sm:$0xff]
          %v1495 = vld [vmem:[%s5 + $0x30] sm:$0xff]
          %v1496 = vld [vmem:[%s5 + $0x38] sm:$0xff]
          %v1497 = vld [vmem:[%s6] sm:$0x1]
          %v1499 = vperm.slane %v1497, 0
          %v1502 = vsel %vm1184, %v1487, 0
          %v1505 = vsel %vm1184, %v1488, 0
          %1507 = vmatpush.msra.mxu0 0.0
          %1508 = vmatpush.msra.mxu0 0.0
          %1509 = vmatpush.msra.mxu0 0.0
          %1510 = vmatpush.msra.mxu0 0.0
          %1511 = vmatpush.msra.mxu0 0.0
          %1512 = vmatpush.msra.mxu0 0.0
          %1513 = vmatpush.msra.mxu0 0.0
          %1514 = vmatpush.msra.mxu0 0.0
          %v1515 = vand.u32 %v1496, 4294901760
          %1516 = vmatpush.msra.mxu0 %v1515
          %v1517 = vand.u32 %v1495, 4294901760
          %1518 = vmatpush.msra.mxu0 %v1517
          %v1519 = vand.u32 %v1494, 4294901760
          %1520 = vmatpush.msra.mxu0 %v1519
          %v1521 = vand.u32 %v1493, 4294901760
          %1522 = vmatpush.msra.mxu0 %v1521
          %v1523 = vand.u32 %v1492, 4294901760
          %1524 = vmatpush.msra.mxu0 %v1523
          %v1525 = vand.u32 %v1491, 4294901760
          %1526 = vmatpush.msra.mxu0 %v1525
          %v1527 = vand.u32 %v1490, 4294901760
          %1528 = vmatpush.msra.mxu0 %v1527
          %v1529 = vand.u32 %v1489, 4294901760
          %1530 = vmatpush.msra.mxu0 %v1529
          %v1531 = vand.u32 %v1502, 4294901760
          %v1532 = vsub.f32 %v1502, %v1531
          %v1533 = vand.u32 %v1532, 4294901760
          %v1534 = vsub.f32 %v1532, %v1533
          %v1535 = vand.u32 %v1534, 4294901760
          %1536 = vmatmul.f32.gmra.mxu0 %v1535
          %v1537 = vpop.f32.mrf.mxu0
          %v1538 = vadd.f32 %v1499, %v1537
          %v1539 = vand.u32 %v1505, 4294901760
          %v1540 = vsub.f32 %v1505, %v1539
          %v1541 = vand.u32 %v1540, 4294901760
          %v1542 = vsub.f32 %v1540, %v1541
          %v1543 = vand.u32 %v1542, 4294901760
          %1544 = vmatmul.f32.gmra.mxu0 %v1543
          %v1545 = vpop.f32.mrf.mxu0
          %v1546 = vadd.f32 %v1499, %v1545
          %1547 = vdwg.mxu0
          %1548 = vmatpush.msra.mxu0 0.0
          %1549 = vmatpush.msra.mxu0 0.0
          %1550 = vmatpush.msra.mxu0 0.0
          %1551 = vmatpush.msra.mxu0 0.0
          %1552 = vmatpush.msra.mxu0 0.0
          %1553 = vmatpush.msra.mxu0 0.0
          %1554 = vmatpush.msra.mxu0 0.0
          %1555 = vmatpush.msra.mxu0 0.0
          %v1556 = vand.u32 %v1496, 4294901760
          %v1557 = vsub.f32 %v1496, %v1556
          %v1558 = vand.u32 %v1557, 4294901760
          %v1559 = vsub.f32 %v1557, %v1558
          %v1560 = vand.u32 %v1559, 4294901760
          %1561 = vmatpush.msra.mxu0 %v1560
          %v1562 = vand.u32 %v1495, 4294901760
          %v1563 = vsub.f32 %v1495, %v1562
          %v1564 = vand.u32 %v1563, 4294901760
          %v1565 = vsub.f32 %v1563, %v1564
          %v1566 = vand.u32 %v1565, 4294901760
          %1567 = vmatpush.msra.mxu0 %v1566
          %v1568 = vand.u32 %v1494, 4294901760
          %v1569 = vsub.f32 %v1494, %v1568
          %v1570 = vand.u32 %v1569, 4294901760
          %v1571 = vsub.f32 %v1569, %v1570
          %v1572 = vand.u32 %v1571, 4294901760
          %1573 = vmatpush.msra.mxu0 %v1572
          %v1574 = vand.u32 %v1493, 4294901760
          %v1575 = vsub.f32 %v1493, %v1574
          %v1576 = vand.u32 %v1575, 4294901760
          %v1577 = vsub.f32 %v1575, %v1576
          %v1578 = vand.u32 %v1577, 4294901760
          %1579 = vmatpush.msra.mxu0 %v1578
          %v1580 = vand.u32 %v1492, 4294901760
          %v1581 = vsub.f32 %v1492, %v1580
          %v1582 = vand.u32 %v1581, 4294901760
          %v1583 = vsub.f32 %v1581, %v1582
          %v1584 = vand.u32 %v1583, 4294901760
          %1585 = vmatpush.msra.mxu0 %v1584
          %v1586 = vand.u32 %v1491, 4294901760
          %v1587 = vsub.f32 %v1491, %v1586
          %v1588 = vand.u32 %v1587, 4294901760
          %v1589 = vsub.f32 %v1587, %v1588
          %v1590 = vand.u32 %v1589, 4294901760
          %1591 = vmatpush.msra.mxu0 %v1590
          %v1592 = vand.u32 %v1490, 4294901760
          %v1593 = vsub.f32 %v1490, %v1592
          %v1594 = vand.u32 %v1593, 4294901760
          %v1595 = vsub.f32 %v1593, %v1594
          %v1596 = vand.u32 %v1595, 4294901760
          %1597 = vmatpush.msra.mxu0 %v1596
          %v1598 = vand.u32 %v1489, 4294901760
          %v1599 = vsub.f32 %v1489, %v1598
          %v1600 = vand.u32 %v1599, 4294901760
          %v1601 = vsub.f32 %v1599, %v1600
          %v1602 = vand.u32 %v1601, 4294901760
          %1603 = vmatpush.msra.mxu0 %v1602
          %v1604 = vand.u32 %v1502, 4294901760
          %1605 = vmatmul.f32.gmra.mxu0 %v1604
          %v1606 = vpop.f32.mrf.mxu0
          %v1607 = vadd.f32 %v1538, %v1606
          %v1608 = vand.u32 %v1505, 4294901760
          %1609 = vmatmul.f32.gmra.mxu0 %v1608
          %v1610 = vpop.f32.mrf.mxu0
          %v1611 = vadd.f32 %v1546, %v1610
          %1612 = vdwg.mxu0
          %1613 = vmatpush.msra.mxu0 0.0
          %1614 = vmatpush.msra.mxu0 0.0
          %1615 = vmatpush.msra.mxu0 0.0
          %1616 = vmatpush.msra.mxu0 0.0
          %1617 = vmatpush.msra.mxu0 0.0
          %1618 = vmatpush.msra.mxu0 0.0
          %1619 = vmatpush.msra.mxu0 0.0
          %1620 = vmatpush.msra.mxu0 0.0
          %v1621 = vand.u32 %v1496, 4294901760
          %v1622 = vsub.f32 %v1496, %v1621
          %1623 = vmatpush.msra.mxu0 %v1622
          %v1624 = vand.u32 %v1495, 4294901760
          %v1625 = vsub.f32 %v1495, %v1624
          %1626 = vmatpush.msra.mxu0 %v1625
          %v1627 = vand.u32 %v1494, 4294901760
          %v1628 = vsub.f32 %v1494, %v1627
          %1629 = vmatpush.msra.mxu0 %v1628
          %v1630 = vand.u32 %v1493, 4294901760
          %v1631 = vsub.f32 %v1493, %v1630
          %1632 = vmatpush.msra.mxu0 %v1631
          %v1633 = vand.u32 %v1492, 4294901760
          %v1634 = vsub.f32 %v1492, %v1633
          %1635 = vmatpush.msra.mxu0 %v1634
          %v1636 = vand.u32 %v1491, 4294901760
          %v1637 = vsub.f32 %v1491, %v1636
          %1638 = vmatpush.msra.mxu0 %v1637
          %v1639 = vand.u32 %v1490, 4294901760
          %v1640 = vsub.f32 %v1490, %v1639
          %1641 = vmatpush.msra.mxu0 %v1640
          %v1642 = vand.u32 %v1489, 4294901760
          %v1643 = vsub.f32 %v1489, %v1642
          %1644 = vmatpush.msra.mxu0 %v1643
          %v1645 = vand.u32 %v1502, 4294901760
          %v1646 = vsub.f32 %v1502, %v1645
          %1647 = vmatmul.f32.gmra.mxu0 %v1646
          %v1648 = vpop.f32.mrf.mxu0
          %v1649 = vadd.f32 %v1607, %v1648
          %v1650 = vand.u32 %v1505, 4294901760
          %v1651 = vsub.f32 %v1505, %v1650
          %1652 = vmatmul.f32.gmra.mxu0 %v1651
          %v1653 = vpop.f32.mrf.mxu0
          %v1654 = vadd.f32 %v1611, %v1653
          %1655 = vdwg.mxu0
          %1656 = vmatpush.msra.mxu0 0.0
          %1657 = vmatpush.msra.mxu0 0.0
          %1658 = vmatpush.msra.mxu0 0.0
          %1659 = vmatpush.msra.mxu0 0.0
          %1660 = vmatpush.msra.mxu0 0.0
          %1661 = vmatpush.msra.mxu0 0.0
          %1662 = vmatpush.msra.mxu0 0.0
          %1663 = vmatpush.msra.mxu0 0.0
          %v1664 = vand.u32 %v1496, 4294901760
          %1665 = vmatpush.msra.mxu0 %v1664
          %v1666 = vand.u32 %v1495, 4294901760
          %1667 = vmatpush.msra.mxu0 %v1666
          %v1668 = vand.u32 %v1494, 4294901760
          %1669 = vmatpush.msra.mxu0 %v1668
          %v1670 = vand.u32 %v1493, 4294901760
          %1671 = vmatpush.msra.mxu0 %v1670
          %v1672 = vand.u32 %v1492, 4294901760
          %1673 = vmatpush.msra.mxu0 %v1672
          %v1674 = vand.u32 %v1491, 4294901760
          %1675 = vmatpush.msra.mxu0 %v1674
          %v1676 = vand.u32 %v1490, 4294901760
          %1677 = vmatpush.msra.mxu0 %v1676
          %v1678 = vand.u32 %v1489, 4294901760
          %1679 = vmatpush.msra.mxu0 %v1678
          %v1680 = vand.u32 %v1502, 4294901760
          %v1681 = vsub.f32 %v1502, %v1680
          %v1682 = vand.u32 %v1681, 4294901760
          %1683 = vmatmul.f32.gmra.mxu0 %v1682
          %v1684 = vpop.f32.mrf.mxu0
          %v1685 = vadd.f32 %v1649, %v1684
          %v1686 = vand.u32 %v1505, 4294901760
          %v1687 = vsub.f32 %v1505, %v1686
          %v1688 = vand.u32 %v1687, 4294901760
          %1689 = vmatmul.f32.gmra.mxu0 %v1688
          %v1690 = vpop.f32.mrf.mxu0
          %v1691 = vadd.f32 %v1654, %v1690
          %1692 = vdwg.mxu0
          %1693 = vmatpush.msra.mxu0 0.0
          %1694 = vmatpush.msra.mxu0 0.0
          %1695 = vmatpush.msra.mxu0 0.0
          %1696 = vmatpush.msra.mxu0 0.0
          %1697 = vmatpush.msra.mxu0 0.0
          %1698 = vmatpush.msra.mxu0 0.0
          %1699 = vmatpush.msra.mxu0 0.0
          %1700 = vmatpush.msra.mxu0 0.0
          %v1701 = vand.u32 %v1496, 4294901760
          %v1702 = vsub.f32 %v1496, %v1701
          %v1703 = vand.u32 %v1702, 4294901760
          %1704 = vmatpush.msra.mxu0 %v1703
          %v1705 = vand.u32 %v1495, 4294901760
          %v1706 = vsub.f32 %v1495, %v1705
          %v1707 = vand.u32 %v1706, 4294901760
          %1708 = vmatpush.msra.mxu0 %v1707
          %v1709 = vand.u32 %v1494, 4294901760
          %v1710 = vsub.f32 %v1494, %v1709
          %v1711 = vand.u32 %v1710, 4294901760
          %1712 = vmatpush.msra.mxu0 %v1711
          %v1713 = vand.u32 %v1493, 4294901760
          %v1714 = vsub.f32 %v1493, %v1713
          %v1715 = vand.u32 %v1714, 4294901760
          %1716 = vmatpush.msra.mxu0 %v1715
          %v1717 = vand.u32 %v1492, 4294901760
          %v1718 = vsub.f32 %v1492, %v1717
          %v1719 = vand.u32 %v1718, 4294901760
          %1720 = vmatpush.msra.mxu0 %v1719
          %v1721 = vand.u32 %v1491, 4294901760
          %v1722 = vsub.f32 %v1491, %v1721
          %v1723 = vand.u32 %v1722, 4294901760
          %1724 = vmatpush.msra.mxu0 %v1723
          %v1725 = vand.u32 %v1490, 4294901760
          %v1726 = vsub.f32 %v1490, %v1725
          %v1727 = vand.u32 %v1726, 4294901760
          %1728 = vmatpush.msra.mxu0 %v1727
          %v1729 = vand.u32 %v1489, 4294901760
          %v1730 = vsub.f32 %v1489, %v1729
          %v1731 = vand.u32 %v1730, 4294901760
          %1732 = vmatpush.msra.mxu0 %v1731
          %v1733 = vand.u32 %v1502, 4294901760
          %1734 = vmatmul.f32.gmra.mxu0 %v1733
          %v1735 = vpop.f32.mrf.mxu0
          %v1736 = vadd.f32 %v1685, %v1735
          %v1737 = vand.u32 %v1505, 4294901760
          %1738 = vmatmul.f32.gmra.mxu0 %v1737
          %v1739 = vpop.f32.mrf.mxu0
          %v1740 = vadd.f32 %v1691, %v1739
          %1741 = vdwg.mxu0
          %1742 = vmatpush.msra.mxu0 0.0
          %1743 = vmatpush.msra.mxu0 0.0
          %1744 = vmatpush.msra.mxu0 0.0
          %1745 = vmatpush.msra.mxu0 0.0
          %1746 = vmatpush.msra.mxu0 0.0
          %1747 = vmatpush.msra.mxu0 0.0
          %1748 = vmatpush.msra.mxu0 0.0
          %1749 = vmatpush.msra.mxu0 0.0
          %v1750 = vand.u32 %v1496, 4294901760
          %1751 = vmatpush.msra.mxu0 %v1750
          %v1752 = vand.u32 %v1495, 4294901760
          %1753 = vmatpush.msra.mxu0 %v1752
          %v1754 = vand.u32 %v1494, 4294901760
          %1755 = vmatpush.msra.mxu0 %v1754
          %v1756 = vand.u32 %v1493, 4294901760
          %1757 = vmatpush.msra.mxu0 %v1756
          %v1758 = vand.u32 %v1492, 4294901760
          %1759 = vmatpush.msra.mxu0 %v1758
          %v1760 = vand.u32 %v1491, 4294901760
          %1761 = vmatpush.msra.mxu0 %v1760
          %v1762 = vand.u32 %v1490, 4294901760
          %1763 = vmatpush.msra.mxu0 %v1762
          %v1764 = vand.u32 %v1489, 4294901760
          %1765 = vmatpush.msra.mxu0 %v1764
          %v1766 = vand.u32 %v1502, 4294901760
          %1767 = vmatmul.f32.gmra.mxu0 %v1766
          %v1768 = vpop.f32.mrf.mxu0
          %v1769 = vadd.f32 %v1736, %v1768
          %v1770 = vand.u32 %v1505, 4294901760
          %1771 = vmatmul.f32.gmra.mxu0 %v1770
          %v1772 = vpop.f32.mrf.mxu0
          %v1773 = vadd.f32 %v1740, %v1772
          %1774 = vdwg.mxu0
          %v1775 = vld [vmem:[%s7] sm:$0xff]
          %v1776 = vld [vmem:[%s7 + $0x8] sm:$0xff]
          %v1777 = vld [vmem:[%s7 + $0x10] sm:$0xff]
          %v1778 = vld [vmem:[%s7 + $0x18] sm:$0xff]
          %v1779 = vld [vmem:[%s7 + $0x20] sm:$0xff]
          %v1780 = vld [vmem:[%s7 + $0x28] sm:$0xff]
          %v1781 = vld [vmem:[%s7 + $0x30] sm:$0xff]
          %v1782 = vld [vmem:[%s7 + $0x38] sm:$0xff]
          %v1783 = vld [vmem:[%s8] sm:$0x1]
          %v1785 = vperm.slane %v1783, 0
          %1787 = vmatpush.msra.mxu0 0.0
          %1788 = vmatpush.msra.mxu0 0.0
          %1789 = vmatpush.msra.mxu0 0.0
          %1790 = vmatpush.msra.mxu0 0.0
          %1791 = vmatpush.msra.mxu0 0.0
          %1792 = vmatpush.msra.mxu0 0.0
          %1793 = vmatpush.msra.mxu0 0.0
          %1794 = vmatpush.msra.mxu0 0.0
          %v1795 = vand.u32 %v1782, 4294901760
          %1796 = vmatpush.msra.mxu0 %v1795
          %v1797 = vand.u32 %v1781, 4294901760
          %1798 = vmatpush.msra.mxu0 %v1797
          %v1799 = vand.u32 %v1780, 4294901760
          %1800 = vmatpush.msra.mxu0 %v1799
          %v1801 = vand.u32 %v1779, 4294901760
          %1802 = vmatpush.msra.mxu0 %v1801
          %v1803 = vand.u32 %v1778, 4294901760
          %1804 = vmatpush.msra.mxu0 %v1803
          %v1805 = vand.u32 %v1777, 4294901760
          %1806 = vmatpush.msra.mxu0 %v1805
          %v1807 = vand.u32 %v1776, 4294901760
          %1808 = vmatpush.msra.mxu0 %v1807
          %v1809 = vand.u32 %v1775, 4294901760
          %1810 = vmatpush.msra.mxu0 %v1809
          %v1811 = vand.u32 %v1502, 4294901760
          %v1812 = vsub.f32 %v1502, %v1811
          %v1813 = vand.u32 %v1812, 4294901760
          %v1814 = vsub.f32 %v1812, %v1813
          %v1815 = vand.u32 %v1814, 4294901760
          %1816 = vmatmul.f32.gmra.mxu0 %v1815
          %v1817 = vpop.f32.mrf.mxu0
          %v1818 = vadd.f32 %v1785, %v1817
          %v1819 = vand.u32 %v1505, 4294901760
          %v1820 = vsub.f32 %v1505, %v1819
          %v1821 = vand.u32 %v1820, 4294901760
          %v1822 = vsub.f32 %v1820, %v1821
          %v1823 = vand.u32 %v1822, 4294901760
          %1824 = vmatmul.f32.gmra.mxu0 %v1823
          %v1825 = vpop.f32.mrf.mxu0
          %v1826 = vadd.f32 %v1785, %v1825
          %1827 = vdwg.mxu0
          %1828 = vmatpush.msra.mxu0 0.0
          %1829 = vmatpush.msra.mxu0 0.0
          %1830 = vmatpush.msra.mxu0 0.0
          %1831 = vmatpush.msra.mxu0 0.0
          %1832 = vmatpush.msra.mxu0 0.0
          %1833 = vmatpush.msra.mxu0 0.0
          %1834 = vmatpush.msra.mxu0 0.0
          %1835 = vmatpush.msra.mxu0 0.0
          %v1836 = vand.u32 %v1782, 4294901760
          %v1837 = vsub.f32 %v1782, %v1836
          %v1838 = vand.u32 %v1837, 4294901760
          %v1839 = vsub.f32 %v1837, %v1838
          %v1840 = vand.u32 %v1839, 4294901760
          %1841 = vmatpush.msra.mxu0 %v1840
          %v1842 = vand.u32 %v1781, 4294901760
          %v1843 = vsub.f32 %v1781, %v1842
          %v1844 = vand.u32 %v1843, 4294901760
          %v1845 = vsub.f32 %v1843, %v1844
          %v1846 = vand.u32 %v1845, 4294901760
          %1847 = vmatpush.msra.mxu0 %v1846
          %v1848 = vand.u32 %v1780, 4294901760
          %v1849 = vsub.f32 %v1780, %v1848
          %v1850 = vand.u32 %v1849, 4294901760
          %v1851 = vsub.f32 %v1849, %v1850
          %v1852 = vand.u32 %v1851, 4294901760
          %1853 = vmatpush.msra.mxu0 %v1852
          %v1854 = vand.u32 %v1779, 4294901760
          %v1855 = vsub.f32 %v1779, %v1854
          %v1856 = vand.u32 %v1855, 4294901760
          %v1857 = vsub.f32 %v1855, %v1856
          %v1858 = vand.u32 %v1857, 4294901760
          %1859 = vmatpush.msra.mxu0 %v1858
          %v1860 = vand.u32 %v1778, 4294901760
          %v1861 = vsub.f32 %v1778, %v1860
          %v1862 = vand.u32 %v1861, 4294901760
          %v1863 = vsub.f32 %v1861, %v1862
          %v1864 = vand.u32 %v1863, 4294901760
          %1865 = vmatpush.msra.mxu0 %v1864
          %v1866 = vand.u32 %v1777, 4294901760
          %v1867 = vsub.f32 %v1777, %v1866
          %v1868 = vand.u32 %v1867, 4294901760
          %v1869 = vsub.f32 %v1867, %v1868
          %v1870 = vand.u32 %v1869, 4294901760
          %1871 = vmatpush.msra.mxu0 %v1870
          %v1872 = vand.u32 %v1776, 4294901760
          %v1873 = vsub.f32 %v1776, %v1872
          %v1874 = vand.u32 %v1873, 4294901760
          %v1875 = vsub.f32 %v1873, %v1874
          %v1876 = vand.u32 %v1875, 4294901760
          %1877 = vmatpush.msra.mxu0 %v1876
          %v1878 = vand.u32 %v1775, 4294901760
          %v1879 = vsub.f32 %v1775, %v1878
          %v1880 = vand.u32 %v1879, 4294901760
          %v1881 = vsub.f32 %v1879, %v1880
          %v1882 = vand.u32 %v1881, 4294901760
          %1883 = vmatpush.msra.mxu0 %v1882
          %v1884 = vand.u32 %v1502, 4294901760
          %1885 = vmatmul.f32.gmra.mxu0 %v1884
          %v1886 = vpop.f32.mrf.mxu0
          %v1887 = vadd.f32 %v1818, %v1886
          %v1888 = vand.u32 %v1505, 4294901760
          %1889 = vmatmul.f32.gmra.mxu0 %v1888
          %v1890 = vpop.f32.mrf.mxu0
          %v1891 = vadd.f32 %v1826, %v1890
          %1892 = vdwg.mxu0
          %1893 = vmatpush.msra.mxu0 0.0
          %1894 = vmatpush.msra.mxu0 0.0
          %1895 = vmatpush.msra.mxu0 0.0
          %1896 = vmatpush.msra.mxu0 0.0
          %1897 = vmatpush.msra.mxu0 0.0
          %1898 = vmatpush.msra.mxu0 0.0
          %1899 = vmatpush.msra.mxu0 0.0
          %1900 = vmatpush.msra.mxu0 0.0
          %v1901 = vand.u32 %v1782, 4294901760
          %v1902 = vsub.f32 %v1782, %v1901
          %1903 = vmatpush.msra.mxu0 %v1902
          %v1904 = vand.u32 %v1781, 4294901760
          %v1905 = vsub.f32 %v1781, %v1904
          %1906 = vmatpush.msra.mxu0 %v1905
          %v1907 = vand.u32 %v1780, 4294901760
          %v1908 = vsub.f32 %v1780, %v1907
          %1909 = vmatpush.msra.mxu0 %v1908
          %v1910 = vand.u32 %v1779, 4294901760
          %v1911 = vsub.f32 %v1779, %v1910
          %1912 = vmatpush.msra.mxu0 %v1911
          %v1913 = vand.u32 %v1778, 4294901760
          %v1914 = vsub.f32 %v1778, %v1913
          %1915 = vmatpush.msra.mxu0 %v1914
          %v1916 = vand.u32 %v1777, 4294901760
          %v1917 = vsub.f32 %v1777, %v1916
          %1918 = vmatpush.msra.mxu0 %v1917
          %v1919 = vand.u32 %v1776, 4294901760
          %v1920 = vsub.f32 %v1776, %v1919
          %1921 = vmatpush.msra.mxu0 %v1920
          %v1922 = vand.u32 %v1775, 4294901760
          %v1923 = vsub.f32 %v1775, %v1922
          %1924 = vmatpush.msra.mxu0 %v1923
          %v1925 = vand.u32 %v1502, 4294901760
          %v1926 = vsub.f32 %v1502, %v1925
          %1927 = vmatmul.f32.gmra.mxu0 %v1926
          %v1928 = vpop.f32.mrf.mxu0
          %v1929 = vadd.f32 %v1887, %v1928
          %v1930 = vand.u32 %v1505, 4294901760
          %v1931 = vsub.f32 %v1505, %v1930
          %1932 = vmatmul.f32.gmra.mxu0 %v1931
          %v1933 = vpop.f32.mrf.mxu0
          %v1934 = vadd.f32 %v1891, %v1933
          %1935 = vdwg.mxu0
          %1936 = vmatpush.msra.mxu0 0.0
          %1937 = vmatpush.msra.mxu0 0.0
          %1938 = vmatpush.msra.mxu0 0.0
          %1939 = vmatpush.msra.mxu0 0.0
          %1940 = vmatpush.msra.mxu0 0.0
          %1941 = vmatpush.msra.mxu0 0.0
          %1942 = vmatpush.msra.mxu0 0.0
          %1943 = vmatpush.msra.mxu0 0.0
          %v1944 = vand.u32 %v1782, 4294901760
          %1945 = vmatpush.msra.mxu0 %v1944
          %v1946 = vand.u32 %v1781, 4294901760
          %1947 = vmatpush.msra.mxu0 %v1946
          %v1948 = vand.u32 %v1780, 4294901760
          %1949 = vmatpush.msra.mxu0 %v1948
          %v1950 = vand.u32 %v1779, 4294901760
          %1951 = vmatpush.msra.mxu0 %v1950
          %v1952 = vand.u32 %v1778, 4294901760
          %1953 = vmatpush.msra.mxu0 %v1952
          %v1954 = vand.u32 %v1777, 4294901760
          %1955 = vmatpush.msra.mxu0 %v1954
          %v1956 = vand.u32 %v1776, 4294901760
          %1957 = vmatpush.msra.mxu0 %v1956
          %v1958 = vand.u32 %v1775, 4294901760
          %1959 = vmatpush.msra.mxu0 %v1958
          %v1960 = vand.u32 %v1502, 4294901760
          %v1961 = vsub.f32 %v1502, %v1960
          %v1962 = vand.u32 %v1961, 4294901760
          %1963 = vmatmul.f32.gmra.mxu0 %v1962
          %v1964 = vpop.f32.mrf.mxu0
          %v1965 = vadd.f32 %v1929, %v1964
          %v1966 = vand.u32 %v1505, 4294901760
          %v1967 = vsub.f32 %v1505, %v1966
          %v1968 = vand.u32 %v1967, 4294901760
          %1969 = vmatmul.f32.gmra.mxu0 %v1968
          %v1970 = vpop.f32.mrf.mxu0
          %v1971 = vadd.f32 %v1934, %v1970
          %1972 = vdwg.mxu0
          %1973 = vmatpush.msra.mxu0 0.0
          %1974 = vmatpush.msra.mxu0 0.0
          %1975 = vmatpush.msra.mxu0 0.0
          %1976 = vmatpush.msra.mxu0 0.0
          %1977 = vmatpush.msra.mxu0 0.0
          %1978 = vmatpush.msra.mxu0 0.0
          %1979 = vmatpush.msra.mxu0 0.0
          %1980 = vmatpush.msra.mxu0 0.0
          %v1981 = vand.u32 %v1782, 4294901760
          %v1982 = vsub.f32 %v1782, %v1981
          %v1983 = vand.u32 %v1982, 4294901760
          %1984 = vmatpush.msra.mxu0 %v1983
          %v1985 = vand.u32 %v1781, 4294901760
          %v1986 = vsub.f32 %v1781, %v1985
          %v1987 = vand.u32 %v1986, 4294901760
          %1988 = vmatpush.msra.mxu0 %v1987
          %v1989 = vand.u32 %v1780, 4294901760
          %v1990 = vsub.f32 %v1780, %v1989
          %v1991 = vand.u32 %v1990, 4294901760
          %1992 = vmatpush.msra.mxu0 %v1991
          %v1993 = vand.u32 %v1779, 4294901760
          %v1994 = vsub.f32 %v1779, %v1993
          %v1995 = vand.u32 %v1994, 4294901760
          %1996 = vmatpush.msra.mxu0 %v1995
          %v1997 = vand.u32 %v1778, 4294901760
          %v1998 = vsub.f32 %v1778, %v1997
          %v1999 = vand.u32 %v1998, 4294901760
          %2000 = vmatpush.msra.mxu0 %v1999
          %v2001 = vand.u32 %v1777, 4294901760
          %v2002 = vsub.f32 %v1777, %v2001
          %v2003 = vand.u32 %v2002, 4294901760
          %2004 = vmatpush.msra.mxu0 %v2003
          %v2005 = vand.u32 %v1776, 4294901760
          %v2006 = vsub.f32 %v1776, %v2005
          %v2007 = vand.u32 %v2006, 4294901760
          %2008 = vmatpush.msra.mxu0 %v2007
          %v2009 = vand.u32 %v1775, 4294901760
          %v2010 = vsub.f32 %v1775, %v2009
          %v2011 = vand.u32 %v2010, 4294901760
          %2012 = vmatpush.msra.mxu0 %v2011
          %v2013 = vand.u32 %v1502, 4294901760
          %2014 = vmatmul.f32.gmra.mxu0 %v2013
          %v2015 = vpop.f32.mrf.mxu0
          %v2016 = vadd.f32 %v1965, %v2015
          %v2017 = vand.u32 %v1505, 4294901760
          %2018 = vmatmul.f32.gmra.mxu0 %v2017
          %v2019 = vpop.f32.mrf.mxu0
          %v2020 = vadd.f32 %v1971, %v2019
          %2021 = vdwg.mxu0
          %2022 = vmatpush.msra.mxu0 0.0
          %2023 = vmatpush.msra.mxu0 0.0
          %2024 = vmatpush.msra.mxu0 0.0
          %2025 = vmatpush.msra.mxu0 0.0
          %2026 = vmatpush.msra.mxu0 0.0
          %2027 = vmatpush.msra.mxu0 0.0
          %2028 = vmatpush.msra.mxu0 0.0
          %2029 = vmatpush.msra.mxu0 0.0
          %v2030 = vand.u32 %v1782, 4294901760
          %2031 = vmatpush.msra.mxu0 %v2030
          %v2032 = vand.u32 %v1781, 4294901760
          %2033 = vmatpush.msra.mxu0 %v2032
          %v2034 = vand.u32 %v1780, 4294901760
          %2035 = vmatpush.msra.mxu0 %v2034
          %v2036 = vand.u32 %v1779, 4294901760
          %2037 = vmatpush.msra.mxu0 %v2036
          %v2038 = vand.u32 %v1778, 4294901760
          %2039 = vmatpush.msra.mxu0 %v2038
          %v2040 = vand.u32 %v1777, 4294901760
          %2041 = vmatpush.msra.mxu0 %v2040
          %v2042 = vand.u32 %v1776, 4294901760
          %2043 = vmatpush.msra.mxu0 %v2042
          %v2044 = vand.u32 %v1775, 4294901760
          %2045 = vmatpush.msra.mxu0 %v2044
          %v2046 = vand.u32 %v1502, 4294901760
          %2047 = vmatmul.f32.gmra.mxu0 %v2046
          %v2048 = vpop.f32.mrf.mxu0
          %v2049 = vadd.f32 %v2016, %v2048
          %v2050 = vand.u32 %v1505, 4294901760
          %2051 = vmatmul.f32.gmra.mxu0 %v2050
          %v2052 = vpop.f32.mrf.mxu0
          %v2053 = vadd.f32 %v2020, %v2052
          %2054 = vdwg.mxu0
          %v2055 = vmul.f32 %v2049, 2.0
          %v2056 = vmul.f32 %v2053, 2.0
          %v2057 = vadd.f32 %v2055, 1.0
          %v2058 = vadd.f32 %v2056, 1.0
          %v2059 = vmul.f32 %v1769, %v1769
          %v2060 = vmul.f32 %v1773, %v1773
          %v2061 = vsub.f32 %v2057, %v2059
          %v2062 = vsub.f32 %v2058, %v2060
          %v2063 = vmul.f32 %v2055, 1.442695
          %v2064 = vpow.pop %v2063
          %v2065 = vmul.f32 %v2056, 1.442695
          %v2066 = vpow.pop %v2065
          %v2067 = vsub.f32 %v2061, %v2064
          %v2068 = vsub.f32 %v2062, %v2066
          %vm2069 = vcmask 64512
          %v2070 = vsel %vm2069, %v2067, 0.0
          %2071 = vadd.xlane.f32.xlu0 %v2070
          %v2072 = vpop.xlane.xlu0 %2071
          %v2073 = vsel %vm2069, %v2068, 0.0
          %2074 = vadd.xlane.f32.xlu0 %v2073
          %v2075 = vpop.xlane.xlu0 %2074
          %v2076 = vmul.f32 %v2072, -0.5
          %v2077 = vmul.f32 %v2075, -0.5
          %v2078 = vadd.f32 %v2076, %v2077
          %v2079 = vrot.slane %v2078, 4
          %v2080 = vadd.f32 %v2078, %v2079
          %v2081 = vrot.slane %v2080, 2
          %v2082 = vadd.f32 %v2080, %v2081
          %v2083 = vrot.slane %v2082, 1
          %v2084 = vadd.f32 %v2082, %v2083
          %v2085 = vrcp.pop 16.0
          %v2086 = vmul.f32 16.0, %v2085
          %v2087 = vsub.f32 1.0, %v2086
          %v2088 = vmul.f32 %v2085, %v2087
          %v2089 = vadd.f32 %v2085, %v2088
          %vm2090 = vweird.f32 %v2085
          %v2091 = vsel %vm2090, %v2085, %v2089
          %v2092 = vmul.f32 %v2084, %v2091
          %vm2093 = vcmask 0
          %2094 = vst.msk [vmem:[#allocation4] sm:$0x1] %vm2093, %v2092
          %v2095 = vsel %vm2069, %v1769, -inf
          %2096 = vmax.xlane.f32.xlu0 %v2095
          %v2097 = vpop.xlane.xlu0 %2096
          %v2098 = vsel %vm2069, %v1773, -inf
          %2099 = vmax.xlane.f32.xlu0 %v2098
          %v2100 = vpop.xlane.xlu0 %2099
          %v2101 = vsub.f32 %v1769, %v2097
          %v2102 = vsub.f32 %v1773, %v2100
          %v2103 = vmul.f32 %v2101, 1.442695
          %v2104 = vpow.pop %v2103
          %v2105 = vmul.f32 %v2102, 1.442695
          %v2106 = vpow.pop %v2105
          %v2107 = vsel %vm2069, %v2104, 0.0
          %2108 = vadd.xlane.f32.xlu0 %v2107
          %v2109 = vpop.xlane.xlu0 %2108
          %v2110 = vsel %vm2069, %v2106, 0.0
          %2111 = vadd.xlane.f32.xlu0 %v2110
          %v2112 = vpop.xlane.xlu0 %2111
          %v2113 = vrcp.pop %v2109
          %v2114 = vmul.f32 %v2109, %v2113
          %v2115 = vsub.f32 1.0, %v2114
          %v2116 = vmul.f32 %v2113, %v2115
          %v2117 = vadd.f32 %v2113, %v2116
          %vm2118 = vweird.f32 %v2109
          %vm2119 = vweird.f32 %v2113
          %vm2120 = vmor %vm2118, %vm2119
          %v2121 = vsel %vm2120, %v2113, %v2117
          %v2122 = vand.u32 2147483647, %v2109
          %vm2123 = vcmp.eq.f32.partialorder %v2122, 8.507059e+37
          %v2124 = vand.u32 %v2109, 2147483648
          %v2125 = vor.u32 1.1754944e-38, %v2124
          %v2126 = vsel %vm2123, %v2125, %v2121
          %v2127 = vmul.f32 %v2104, %v2126
          %v2128 = vrcp.pop %v2112
          %v2129 = vmul.f32 %v2112, %v2128
          %v2130 = vsub.f32 1.0, %v2129
          %v2131 = vmul.f32 %v2128, %v2130
          %v2132 = vadd.f32 %v2128, %v2131
          %vm2133 = vweird.f32 %v2112
          %vm2134 = vweird.f32 %v2128
          %vm2135 = vmor %vm2133, %vm2134
          %v2136 = vsel %vm2135, %v2128, %v2132
          %v2137 = vand.u32 2147483647, %v2112
          %vm2138 = vcmp.eq.f32.partialorder %v2137, 8.507059e+37
          %v2139 = vand.u32 %v2112, 2147483648
          %v2140 = vor.u32 1.1754944e-38, %v2139
          %v2141 = vsel %vm2138, %v2140, %v2136
          %v2142 = vmul.f32 %v2106, %v2141
          %2143 = vst.msk [vmem:[%s9] sm:$0xff] %vm2069, %v2127
          %2144 = vst.msk [vmem:[%s9 + $0x8] sm:$0xff] %vm2069, %v2142
        $region87: #{tpu_custom_call.1} parent=74 // pred_fallthru
          _
        // Predicated region
        $region88: #{tpu_custom_call.1} parent=74 // pred_check
          %p2145 = pneg %p235
        $region89: #{tpu_custom_call.1} parent=74 // pred_check_branch
          %2147 = sbr.rel (%p2145) target = $region91
        $region90: #{tpu_custom_call.1} parent=74 // pred_region
          _
        $region91: #{tpu_custom_call.1} parent=74 // pred_fallthru
          _
        // Predicated region
        $region92: #{tpu_custom_call.1} parent=74 // pred_check
          %p2148 = pneg %p256
        $region93: #{tpu_custom_call.1} parent=74 // pred_check_branch
          %2150 = sbr.rel (%p2148) target = $region95
        $region94: #{tpu_custom_call.1} parent=74 // pred_region
          %2152 = vsyncadd [#allocation5], 0
          %s2154 = sshll.u32 [#allocation4], 4
          %s2155 = int_to_ptr.vmem [resolvable:$true] %s2154
          %s2156 = sshll.u32 %s10, 4
          %s2157 = int_to_ptr.hbm [resolvable:$true] %s2156
          %2159 = dma.vmem_to_hbm [thread:$0]  %s2155, 16, %s2157, [#allocation5]
        $region95: #{tpu_custom_call.1} parent=74 // pred_fallthru
          _
        // Predicated region
        $region96: #{tpu_custom_call.1} parent=74 // pred_check
          %p2160 = pneg %p235
        $region97: #{tpu_custom_call.1} parent=74 // pred_check_branch
          %2162 = sbr.rel (%p2160) target = $region99
        $region98: #{tpu_custom_call.1} parent=74 // pred_region
          _
        $region99: #{tpu_custom_call.1} parent=74 // pred_fallthru
          _
        // Predicated region
        $region100: #{tpu_custom_call.1} parent=74 // pred_check
          %p2163 = pneg %p256
        $region101: #{tpu_custom_call.1} parent=74 // pred_check_branch
          %2165 = sbr.rel (%p2163) target = $region103
        $region102: #{tpu_custom_call.1} parent=74 // pred_region
          %2167 = dma.done [#allocation5], 16
        $region103: #{tpu_custom_call.1} parent=74 // pred_fallthru
          _
      $region75: #{tpu_custom_call.1} parent=5 // pred_fallthru
        _
      %p2168 = scmp.le.s32.totalorder 2, %s18
      // Predicated region
      $region104: #{tpu_custom_call.1} parent=5 // pred_check
        %p2169 = pneg %p2168
      $region105: #{tpu_custom_call.1} parent=5 // pred_check_branch
        %2171 = sbr.rel (%p2169) target = $region107
      $region106: #{tpu_custom_call.1} parent=5 // pred_region
        %s2172 = ssub.s32 %s18, 2
      $region107: #{tpu_custom_call.1} parent=5 // pred_fallthru
        _
    $region6: #{tpu_custom_call.1} parent=1 // loop_footer
      %s22 = sadd.s32 1, %s18
    $region7: #{tpu_custom_call.1} parent=1 // loop_footer_branch
      %17 = sbr.rel target = $region3
    $region8: #{tpu_custom_call.1} parent=1 // loop_exit
      _
    %2173 = vsyncpa [#allocation5], 1
    %s2174 = scalar_lea.sflag [#allocation5], 1
    %2175 = vsyncpa %s2174, 1

</llo_original>
